<compile_context>
chip_gen: v7x
topology: tpu7x:2x2x1
jax: 0.10.0
libtpu: 0.0.40
codegen_flags: <defaults>
</compile_context>

<pallas_src>
import functools

import numpy as np
import jax
import jax.numpy as jnp
from jax import lax
from jax.experimental import pallas as pl
from jax.experimental.pallas import tpu as pltpu


# ----------------------------------------------------------------------------
# Fully fused encoder kernel (single pallas_call for the whole forward pass)
# ----------------------------------------------------------------------------
def _encoder_kernel(geom, p1_ref, w1_ref, g1_ref, b1_ref, w2_ref, g2_ref, b2_ref,
                    mask_ref, wh_ref, bh_ref, out_ref, y1pad_ref, p2_ref, flat_ref):
    n = geom["n"]
    c1, c2 = geom["c1"], geom["c2"]
    m2, s2 = geom["m2"], geom["s2"]
    ph_stride, ph_pad = geom["ph_stride"], geom["ph_pad"]
    tap_phase, tap_shift = geom["tap_phase"], geom["tap_shift"]
    taps = len(tap_phase)

    def bn_lrelu(y, g_ref, b_ref, rows):
        # Training-mode BatchNorm2d (biased batch variance, eps=1e-5) folded into a
        # single per-channel FMA, fused with LeakyReLU(0.01).  Conv bias is omitted
        # upstream: the batch-mean subtraction cancels it exactly.
        inv_m = 1.0 / rows
        mean = jnp.sum(y, axis=0, keepdims=True) * inv_m
        var = jnp.sum(y * y, axis=0, keepdims=True) * inv_m - mean * mean
        scale = g_ref[...] * lax.rsqrt(var + 1e-5)
        shift = b_ref[...] - mean * scale
        z = y * scale + shift
        return jnp.where(z >= 0.0, z, 0.01 * z)

    # ---- layer 1: conv as ONE GEMM (K = 9*Cin); patches built in the wrapper ----
    y1 = jnp.dot(p1_ref[...], w1_ref[...], preferred_element_type=jnp.float32)
    a1 = bn_lrelu(y1, g1_ref, b1_ref, p1_ref.shape[0])   # [m1, c1], rows (phase, s1, n)

    # ---- layer 2 im2col, entirely in VMEM with static slices (no gather GEMM) ----
    # a1's rows are grouped by the (H, W) parity of their spatial position ("phase"),
    # so each conv2 tap is a contiguous, shifted slice of one zero-padded phase block.
    y1pad_ref[...] = jnp.zeros(y1pad_ref.shape, jnp.float32)
    for ph in range(4):
        base = ph * ph_stride + ph_pad
        y1pad_ref[base:base + m2, :] = a1[ph * m2:(ph + 1) * m2, :]
    mask_all = mask_ref[...]                              # [m2, taps] constant 0/1
    for t in range(taps):
        start = tap_phase[t] * ph_stride + ph_pad - tap_shift[t]
        p2_ref[:, t * c1:(t + 1) * c1] = (
            y1pad_ref[start:start + m2, :] * mask_all[:, t:t + 1])

    # ---- layer 2: conv as ONE GEMM (K = 9*C1) + fused BN + LeakyReLU ----
    y2 = jnp.dot(p2_ref[...], w2_ref[...], preferred_element_type=jnp.float32)
    a2 = bn_lrelu(y2, g2_ref, b2_ref, m2)                 # [m2, c2], rows (s2, n)

    # ---- flatten + BOTH heads as ONE GEMM (K = s2*c2), single [N, 2L] store ----
    # a2 rows are ordered (spatial, batch), so each spatial position is a contiguous
    # [N, c2] block; 16 static VMEM copies build the [N, s2*c2] flat slab.
    for s in range(s2):
        flat_ref[:, s * c2:(s + 1) * c2] = a2[s * n:(s + 1) * n, :]
    out_ref[...] = (jnp.dot(flat_ref[...], wh_ref[...],
                            preferred_element_type=jnp.float32) + bh_ref[...])


# ----------------------------------------------------------------------------
# Host-side preparation: static geometry + matmul-ready constants
# ----------------------------------------------------------------------------
def prepare_encoder(params, input_shape):
    n, c_in, h, w = input_shape
    convs = params["conv_layers"]
    # TODO(synk): generalize the in-kernel phase-split im2col beyond two
    # k=3 / stride=2 / pad=1 conv layers (the geometry this Encoder instantiates).
    assert len(convs) == 2
    (w1, _cb1, g1, be1, s1, p1), (w2, _cb2, g2, be2, s2_, p2_) = convs
    kh1, kw1, ci1, co1 = w1.shape
    kh2, kw2, ci2, co2 = w2.shape
    assert (kh1, kw1, s1, p1) == (3, 3, 2, 1) and (kh2, kw2, s2_, p2_) == (3, 3, 2, 1)
    assert ci1 == c_in and ci2 == co1 and h % 4 == 0 and w % 4 == 0

    ho, wo = h // 2, w // 2            # conv1 output spatial
    h2, w2o = ho // 2, wo // 2         # conv2 output spatial
    m2 = n * h2 * w2o                  # conv2 output rows (== rows per phase block)
    s2 = h2 * w2o
    latent = params["w_mean"].shape[1]
    assert params["w_mean"].shape[0] == co2 * s2

    taps = kh2 * kw2
    tap_phase, tap_shift = [], []
    masks = np.ones((m2, taps), np.float32)
    for t in range(taps):
        i, j = divmod(t, kw2)
        a = 0 if i == 1 else 1         # H-parity of the conv1 row this tap reads
        b = 0 if j == 1 else 1         # W-parity
        du = 1 if i == 0 else 0        # within-phase row shift (H)
        dv = 1 if j == 0 else 0        # within-phase row shift (W)
        tap_phase.append(a * 2 + b)
        tap_shift.append((du * w2o + dv) * n)
        for r in range(m2):
            u, v = divmod(r // n, w2o)
            if u < du or v < dv:
                masks[r, t] = 0.0      # conv2's zero-padding region
    max_shift = (w2o + 1) * n
    ph_pad = ((max_shift + 7) // 8) * 8          # zero rows in front of each phase block
    ph_stride = ph_pad + m2

    geom = dict(n=n, c1=co1, c2=co2, m2=m2, s2=s2,
                ph_stride=ph_stride, ph_pad=ph_pad,
                tap_phase=tuple(tap_phase), tap_shift=tuple(tap_shift))

    # Head weights pre-permuted so flat order (spatial-major, channel-minor) matches
    # torch's NCHW flatten; both heads concatenated along the output-lane axis.
    wm = jnp.transpose(params["w_mean"].reshape(co2, s2, latent), (1, 0, 2))
    wv = jnp.transpose(params["w_var"].reshape(co2, s2, latent), (1, 0, 2))
    consts = dict(
        w1f=w1.reshape(kh1 * kw1 * ci1, co1),            # tap-major flattened conv1 W
        g1=g1.reshape(1, co1), be1=be1.reshape(1, co1),
        w2f=w2.reshape(kh2 * kw2 * ci2, co2),            # tap-major flattened conv2 W
        g2=g2.reshape(1, co2), be2=be2.reshape(1, co2),
        masks=jnp.asarray(masks),
        wh=jnp.concatenate([wm, wv], axis=-1).reshape(s2 * co2, 2 * latent),
        bh=jnp.concatenate([params["b_mean"], params["b_var"]], axis=-1),
    )
    dims = dict(c_in=c_in, h=h, w=w, ho=ho, wo=wo, latent=latent)
    return geom, consts, dims


def _layer1_patches(x_nchw, geom, dims):
    """Wrapper-side layout plumbing (no compute): im2col of the raw input for conv1,
    with rows ordered (H-parity, W-parity, spatial, batch) so the in-kernel conv2
    im2col only needs static contiguous slices."""
    n = geom["n"]
    c, ho, wo = dims["c_in"], dims["ho"], dims["wo"]
    xp = jnp.pad(x_nchw.astype(jnp.float32), ((0, 0), (0, 0), (1, 1), (1, 1)))
    cols = [xp[:, :, i:i + 2 * ho:2, j:j + 2 * wo:2]     # [n, c, ho, wo] per tap
            for i in range(3) for j in range(3)]
    t = jnp.stack(cols, axis=0)                          # [9, n, c, ho, wo]
    t = t.reshape(9, n, c, ho // 2, 2, wo // 2, 2)       # (tap, n, c, p, a, q, b)
    t = jnp.transpose(t, (4, 6, 3, 5, 1, 0, 2))          # (a, b, p, q, n, tap, c)
    return t.reshape(4 * (ho // 2) * (wo // 2) * n, 9 * c)


# ----------------------------------------------------------------------------
# Encoder forward: one pallas_call, everything fused
# ----------------------------------------------------------------------------
def encoder_forward(x_nchw, prepared):
    geom, consts, dims = prepared
    n, latent = geom["n"], dims["latent"]
    c1, c2, m2, s2 = geom["c1"], geom["c2"], geom["m2"], geom["s2"]
    taps = len(geom["tap_phase"])

    patches1 = _layer1_patches(x_nchw, geom, dims)       # [m1, 9*Cin]
    args = [patches1, consts["w1f"], consts["g1"], consts["be1"],
            consts["w2f"], consts["g2"], consts["be2"],
            consts["masks"], consts["wh"], consts["bh"]]

    def full_spec(a):
        return pl.BlockSpec(a.shape, lambda i, _z=(0,) * a.ndim: _z)

    m1, k1 = patches1.shape
    flops = 2 * (m1 * k1 * c1 + m2 * (taps * c1) * c2 + n * (s2 * c2) * (2 * latent))
    bytes_accessed = sum(int(np.prod(a.shape)) * 4 for a in args) + n * 2 * latent * 4

    out = pl.pallas_call(
        functools.partial(_encoder_kernel, geom),
        out_shape=jax.ShapeDtypeStruct((n, 2 * latent), jnp.float32),
        grid=(1,),
        in_specs=[full_spec(a) for a in args],
        out_specs=pl.BlockSpec((n, 2 * latent), lambda i: (0, 0)),
        scratch_shapes=[
            pltpu.VMEM((4 * geom["ph_stride"], c1), jnp.float32),  # padded phase blocks
            pltpu.VMEM((m2, taps * c1), jnp.float32),              # conv2 im2col patches
            pltpu.VMEM((n, s2 * c2), jnp.float32),                 # flattened activations
        ],
        compiler_params=pltpu.CompilerParams(dimension_semantics=("arbitrary",)),
        cost_estimate=pl.CostEstimate(flops=int(flops), transcendentals=c1 + c2,
                                      bytes_accessed=int(bytes_accessed)),
    )(*args)
    return out[:, :latent], out[:, latent:]


# ----------------------------------------------------------------------------
# Pure-JAX reference (mirrors the PyTorch module, incl. the conv biases)
# ----------------------------------------------------------------------------
def encoder_reference(x, params):
    def conv_bn_lrelu(a, w, b, gamma, beta, stride, pad):
        wt = jnp.transpose(w, (3, 2, 0, 1))              # [kh,kw,ci,co] -> OIHW
        y = lax.conv_general_dilated(a, wt, (stride, stride),
                                     [(pad, pad), (pad, pad)],
                                     dimension_numbers=("NCHW", "OIHW", "NCHW"))
        y = y + b.reshape(1, -1, 1, 1)
        mean = jnp.mean(y, axis=(0, 2, 3), keepdims=True)
        var = jnp.mean((y - mean) ** 2, axis=(0, 2, 3), keepdims=True)
        z = ((y - mean) * lax.rsqrt(var + 1e-5) * gamma.reshape(1, -1, 1, 1)
             + beta.reshape(1, -1, 1, 1))
        return jnp.where(z >= 0.0, z, 0.01 * z)

    a = x
    for (w, b, gamma, beta, stride, pad) in params["conv_layers"]:
        a = conv_bn_lrelu(a, w, b, gamma, beta, stride, pad)
    flat = a.reshape(a.shape[0], -1)                     # torch NCHW view(N, -1)
    means = flat @ params["w_mean"] + params["b_mean"]
    log_vars = flat @ params["w_var"] + params["b_var"]
    return means, log_vars


# ----------------------------------------------------------------------------
# Deterministic parameter initialization (mirrors the torch module's params)
# ----------------------------------------------------------------------------
def init_params(kernel_sizes, latent_dim, key):
    conv_layers = []
    for shape in kernel_sizes[:-1]:
        cin, cout, k, stride, pad = shape
        key, kw_key, kb_key = jax.random.split(key, 3)
        w = 0.1 * jax.random.normal(kw_key, (k, k, cin, cout), jnp.float32)
        # Conv bias exists for parameter parity with nn.Conv2d; training-mode
        # BatchNorm cancels it, so the fused kernel does not consume it.
        b = 0.1 * jax.random.normal(kb_key, (cout,), jnp.float32)
        gamma = jnp.ones((cout,), jnp.float32)           # BatchNorm2d default weight
        beta = jnp.zeros((cout,), jnp.float32)           # BatchNorm2d default bias
        conv_layers.append((w, b, gamma, beta, stride, pad))

    fc_in = kernel_sizes[-1]
    key, k1, k2, k3, k4 = jax.random.split(key, 5)
    return {
        "conv_layers": conv_layers,
        "w_mean": 0.1 * jax.random.normal(k1, (fc_in, latent_dim), jnp.float32),
        "b_mean": 0.1 * jax.random.normal(k2, (1, latent_dim), jnp.float32),
        "w_var": 0.1 * jax.random.normal(k3, (fc_in, latent_dim), jnp.float32),
        "b_var": 0.1 * jax.random.normal(k4, (1, latent_dim), jnp.float32),
    }


# ----------------------------------------------------------------------------
# Main
# ----------------------------------------------------------------------------
if __name__ == "__main__":
    key = jax.random.PRNGKey(0)
    key, xkey, pkey = jax.random.split(key, 3)

    # kernel_sizes: (C_in, C_out, k, stride, pad) per conv layer; last entry is the
    # flattened feature size feeding the linear heads.
    # x: [2, 4, 16, 16] -> conv1 -> [2, 8, 8, 8] -> conv2 -> [2, 16, 4, 4]
    # flatten -> [2, 256] -> heads -> two [2, 32]
    kernel_sizes = [(4, 8, 3, 2, 1), (8, 16, 3, 2, 1), 256]
    latent_dim = 32

    x = jax.random.normal(xkey, (2, 4, 16, 16), jnp.float32)   # NCHW like PyTorch
    params = init_params(kernel_sizes, latent_dim, pkey)
    prepared = prepare_encoder(params, x.shape)

    fwd = jax.jit(lambda xx: encoder_forward(xx, prepared))
    means, log_vars = fwd(x)
    jax.block_until_ready((means, log_vars))

    assert means.shape == (2, latent_dim)
    assert log_vars.shape == (2, latent_dim)

    ref_means, ref_log_vars = encoder_reference(x, params)
    err = max(float(jnp.max(jnp.abs(means - ref_means))),
              float(jnp.max(jnp.abs(log_vars - ref_log_vars))))
    assert err < 5e-3, f"mismatch vs pure-JAX reference: {err}"

    print("KERNEL_OK")
</pallas_src>

<mosaic_0001>
module attributes {stable_mosaic.version = 11 : i64} {
  func.func @_encoder_kernel(%arg0: i32, %arg1: memref<128x36xf32, #tpu.memory_space<vmem>>, %arg2: memref<36x8xf32, #tpu.memory_space<vmem>>, %arg3: memref<1x8xf32, #tpu.memory_space<vmem>>, %arg4: memref<1x8xf32, #tpu.memory_space<vmem>>, %arg5: memref<72x16xf32, #tpu.memory_space<vmem>>, %arg6: memref<1x16xf32, #tpu.memory_space<vmem>>, %arg7: memref<1x16xf32, #tpu.memory_space<vmem>>, %arg8: memref<32x9xf32, #tpu.memory_space<vmem>>, %arg9: memref<256x64xf32, #tpu.memory_space<vmem>>, %arg10: memref<1x64xf32, #tpu.memory_space<vmem>>, %arg11: memref<2x64xf32, #tpu.memory_space<vmem>>, %arg12: memref<192x8xf32, #tpu.memory_space<vmem>>, %arg13: memref<32x72xf32, #tpu.memory_space<vmem>>, %arg14: memref<2x256xf32, #tpu.memory_space<vmem>>) attributes {dimension_semantics = [#tpu.dimension_semantics<arbitrary>], iteration_bounds = array<i64: 1>, scalar_prefetch = 0 : i64, scratch_operands = 3 : i64, tpu.core_type = #tpu.core_type<tc>, window_params = [{pipeline_mode = #tpu.pipeline_mode<synchronous>, transform_indices = @transform_0, window_bounds = array<i64: 128, 36>}, {pipeline_mode = #tpu.pipeline_mode<synchronous>, transform_indices = @transform_1, window_bounds = array<i64: 36, 8>}, {pipeline_mode = #tpu.pipeline_mode<synchronous>, transform_indices = @transform_2, window_bounds = array<i64: 1, 8>}, {pipeline_mode = #tpu.pipeline_mode<synchronous>, transform_indices = @transform_3, window_bounds = array<i64: 1, 8>}, {pipeline_mode = #tpu.pipeline_mode<synchronous>, transform_indices = @transform_4, window_bounds = array<i64: 72, 16>}, {pipeline_mode = #tpu.pipeline_mode<synchronous>, transform_indices = @transform_5, window_bounds = array<i64: 1, 16>}, {pipeline_mode = #tpu.pipeline_mode<synchronous>, transform_indices = @transform_6, window_bounds = array<i64: 1, 16>}, {pipeline_mode = #tpu.pipeline_mode<synchronous>, transform_indices = @transform_7, window_bounds = array<i64: 32, 9>}, {pipeline_mode = #tpu.pipeline_mode<synchronous>, transform_indices = @transform_8, window_bounds = array<i64: 256, 64>}, {pipeline_mode = #tpu.pipeline_mode<synchronous>, transform_indices = @transform_9, window_bounds = array<i64: 1, 64>}, {pipeline_mode = #tpu.pipeline_mode<synchronous>, transform_indices = @transform_10, window_bounds = array<i64: 2, 64>}]} {
    %c0 = arith.constant 0 : index
    %c0_0 = arith.constant 0 : index
    %0 = vector.load %arg1[%c0, %c0_0] : memref<128x36xf32, #tpu.memory_space<vmem>>, vector<128x36xf32>
    %c0_1 = arith.constant 0 : index
    %c0_2 = arith.constant 0 : index
    %1 = vector.load %arg2[%c0_1, %c0_2] : memref<36x8xf32, #tpu.memory_space<vmem>>, vector<36x8xf32>
    %cst = arith.constant dense<0.000000e+00> : vector<128x8xf32>
    %2 = tpu.matmul %0, %1, %cst {dimension_numbers = #tpu.dot_dimension_numbers<[1], [0], [0], [1], [0, 0, 1, 1], [], []>} : vector<128x36xf32>, vector<36x8xf32>, vector<128x8xf32> -> vector<128x8xf32>
    %cst_3 = arith.constant dense<0.000000e+00> : vector<8xf32>
    %3 = vector.multi_reduction <add>, %2, %cst_3 [0] : vector<128x8xf32> to vector<8xf32>
    %4 = vector.shape_cast %3 : vector<8xf32> to vector<1x8xf32>
    %cst_4 = arith.constant 7.812500e-03 : f32
    %5 = vector.broadcast %cst_4 : f32 to vector<1x8xf32>
    %6 = arith.mulf %4, %5 : vector<1x8xf32>
    %7 = arith.mulf %2, %2 : vector<128x8xf32>
    %cst_5 = arith.constant dense<0.000000e+00> : vector<8xf32>
    %8 = vector.multi_reduction <add>, %7, %cst_5 [0] : vector<128x8xf32> to vector<8xf32>
    %9 = vector.shape_cast %8 : vector<8xf32> to vector<1x8xf32>
    %cst_6 = arith.constant 7.812500e-03 : f32
    %10 = vector.broadcast %cst_6 : f32 to vector<1x8xf32>
    %11 = arith.mulf %9, %10 : vector<1x8xf32>
    %12 = arith.mulf %6, %6 : vector<1x8xf32>
    %13 = arith.subf %11, %12 : vector<1x8xf32>
    %c0_7 = arith.constant 0 : index
    %c0_8 = arith.constant 0 : index
    %14 = vector.load %arg3[%c0_7, %c0_8] : memref<1x8xf32, #tpu.memory_space<vmem>>, vector<1x8xf32>
    %cst_9 = arith.constant 9.99999974E-6 : f32
    %15 = vector.broadcast %cst_9 : f32 to vector<1x8xf32>
    %16 = arith.addf %13, %15 : vector<1x8xf32>
    %17 = math.rsqrt %16 : vector<1x8xf32>
    %18 = arith.mulf %14, %17 : vector<1x8xf32>
    %c0_10 = arith.constant 0 : index
    %c0_11 = arith.constant 0 : index
    %19 = vector.load %arg4[%c0_10, %c0_11] : memref<1x8xf32, #tpu.memory_space<vmem>>, vector<1x8xf32>
    %20 = arith.mulf %6, %18 : vector<1x8xf32>
    %21 = arith.subf %19, %20 : vector<1x8xf32>
    %22 = vector.broadcast %18 : vector<1x8xf32> to vector<128x8xf32>
    %23 = arith.mulf %2, %22 : vector<128x8xf32>
    %24 = vector.broadcast %21 : vector<1x8xf32> to vector<128x8xf32>
    %25 = arith.addf %23, %24 : vector<128x8xf32>
    %cst_12 = arith.constant 0.000000e+00 : f32
    %26 = vector.broadcast %cst_12 : f32 to vector<128x8xf32>
    %27 = arith.cmpf oge, %25, %26 : vector<128x8xf32>
    %cst_13 = arith.constant 0.00999999977 : f32
    %28 = vector.broadcast %cst_13 : f32 to vector<128x8xf32>
    %29 = arith.mulf %28, %25 : vector<128x8xf32>
    %30 = arith.select %27, %25, %29 : vector<128x8xi1>, vector<128x8xf32>
    %cst_14 = arith.constant 0.000000e+00 : f32
    %31 = vector.broadcast %cst_14 : f32 to vector<192x8xf32>
    %c0_15 = arith.constant 0 : index
    %c0_16 = arith.constant 0 : index
    %32 = vector.load %arg12[%c0_15, %c0_16] : memref<192x8xf32, #tpu.memory_space<vmem>>, vector<192x8xf32>
    tpu.vector_store %arg12[%c0_15, %c0_16], %31 {strides = array<i32>} : memref<192x8xf32, #tpu.memory_space<vmem>>, vector<192x8xf32>,
    %33 = vector.extract_strided_slice %30 {offsets = [0, 0], sizes = [32, 8], strides = [1, 1]} : vector<128x8xf32> to vector<32x8xf32>
    %c16 = arith.constant 16 : index
    %c0_17 = arith.constant 0 : index
    %34 = vector.load %arg12[%c16, %c0_17] : memref<192x8xf32, #tpu.memory_space<vmem>>, vector<32x8xf32>
    tpu.vector_store %arg12[%c16, %c0_17], %33 {strides = array<i32>} : memref<192x8xf32, #tpu.memory_space<vmem>>, vector<32x8xf32>,
    %35 = vector.extract_strided_slice %30 {offsets = [32, 0], sizes = [32, 8], strides = [1, 1]} : vector<128x8xf32> to vector<32x8xf32>
    %c64 = arith.constant 64 : index
    %c0_18 = arith.constant 0 : index
    %36 = vector.load %arg12[%c64, %c0_18] : memref<192x8xf32, #tpu.memory_space<vmem>>, vector<32x8xf32>
    tpu.vector_store %arg12[%c64, %c0_18], %35 {strides = array<i32>} : memref<192x8xf32, #tpu.memory_space<vmem>>, vector<32x8xf32>,
    %37 = vector.extract_strided_slice %30 {offsets = [64, 0], sizes = [32, 8], strides = [1, 1]} : vector<128x8xf32> to vector<32x8xf32>
    %c112 = arith.constant 112 : index
    %c0_19 = arith.constant 0 : index
    %38 = vector.load %arg12[%c112, %c0_19] : memref<192x8xf32, #tpu.memory_space<vmem>>, vector<32x8xf32>
    tpu.vector_store %arg12[%c112, %c0_19], %37 {strides = array<i32>} : memref<192x8xf32, #tpu.memory_space<vmem>>, vector<32x8xf32>,
    %39 = vector.extract_strided_slice %30 {offsets = [96, 0], sizes = [32, 8], strides = [1, 1]} : vector<128x8xf32> to vector<32x8xf32>
    %c160 = arith.constant 160 : index
    %c0_20 = arith.constant 0 : index
    %40 = vector.load %arg12[%c160, %c0_20] : memref<192x8xf32, #tpu.memory_space<vmem>>, vector<32x8xf32>
    tpu.vector_store %arg12[%c160, %c0_20], %39 {strides = array<i32>} : memref<192x8xf32, #tpu.memory_space<vmem>>, vector<32x8xf32>,
    %c0_21 = arith.constant 0 : index
    %c0_22 = arith.constant 0 : index
    %41 = vector.load %arg8[%c0_21, %c0_22] : memref<32x9xf32, #tpu.memory_space<vmem>>, vector<32x9xf32>
    %c150 = arith.constant 150 : index
    %c0_23 = arith.constant 0 : index
    %42 = vector.load %arg12[%c150, %c0_23] : memref<192x8xf32, #tpu.memory_space<vmem>>, vector<32x8xf32>
    %43 = vector.extract_strided_slice %41 {offsets = [0, 0], sizes = [32, 1], strides = [1, 1]} : vector<32x9xf32> to vector<32x1xf32>
    %44 = vector.broadcast %43 : vector<32x1xf32> to vector<32x8xf32>
    %45 = arith.mulf %42, %44 : vector<32x8xf32>
    %c0_24 = arith.constant 0 : index
    %c0_25 = arith.constant 0 : index
    %46 = vector.load %arg13[%c0_24, %c0_25] : memref<32x72xf32, #tpu.memory_space<vmem>>, vector<32x8xf32>
    tpu.vector_store %arg13[%c0_24, %c0_25], %45 {strides = array<i32>} : memref<32x72xf32, #tpu.memory_space<vmem>>, vector<32x8xf32>,
    %c104 = arith.constant 104 : index
    %c0_26 = arith.constant 0 : index
    %47 = vector.load %arg12[%c104, %c0_26] : memref<192x8xf32, #tpu.memory_space<vmem>>, vector<32x8xf32>
    %48 = vector.extract_strided_slice %41 {offsets = [0, 1], sizes = [32, 1], strides = [1, 1]} : vector<32x9xf32> to vector<32x1xf32>
    %49 = vector.broadcast %48 : vector<32x1xf32> to vector<32x8xf32>
    %50 = arith.mulf %47, %49 : vector<32x8xf32>
    %c0_27 = arith.constant 0 : index
    %c8 = arith.constant 8 : index
    %51 = vector.load %arg13[%c0_27, %c8] : memref<32x72xf32, #tpu.memory_space<vmem>>, vector<32x8xf32>
    tpu.vector_store %arg13[%c0_27, %c8], %50 {strides = array<i32>} : memref<32x72xf32, #tpu.memory_space<vmem>>, vector<32x8xf32>,
    %c152 = arith.constant 152 : index
    %c0_28 = arith.constant 0 : index
    %52 = vector.load %arg12[%c152, %c0_28] : memref<192x8xf32, #tpu.memory_space<vmem>>, vector<32x8xf32>
    %53 = vector.extract_strided_slice %41 {offsets = [0, 2], sizes = [32, 1], strides = [1, 1]} : vector<32x9xf32> to vector<32x1xf32>
    %54 = vector.broadcast %53 : vector<32x1xf32> to vector<32x8xf32>
    %55 = arith.mulf %52, %54 : vector<32x8xf32>
    %c0_29 = arith.constant 0 : index
    %c16_30 = arith.constant 16 : index
    %56 = vector.load %arg13[%c0_29, %c16_30] : memref<32x72xf32, #tpu.memory_space<vmem>>, vector<32x8xf32>
    tpu.vector_store %arg13[%c0_29, %c16_30], %55 {strides = array<i32>} : memref<32x72xf32, #tpu.memory_space<vmem>>, vector<32x8xf32>,
    %c62 = arith.constant 62 : index
    %c0_31 = arith.constant 0 : index
    %57 = vector.load %arg12[%c62, %c0_31] : memref<192x8xf32, #tpu.memory_space<vmem>>, vector<32x8xf32>
    %58 = vector.extract_strided_slice %41 {offsets = [0, 3], sizes = [32, 1], strides = [1, 1]} : vector<32x9xf32> to vector<32x1xf32>
    %59 = vector.broadcast %58 : vector<32x1xf32> to vector<32x8xf32>
    %60 = arith.mulf %57, %59 : vector<32x8xf32>
    %c0_32 = arith.constant 0 : index
    %c24 = arith.constant 24 : index
    %61 = vector.load %arg13[%c0_32, %c24] : memref<32x72xf32, #tpu.memory_space<vmem>>, vector<32x8xf32>
    tpu.vector_store %arg13[%c0_32, %c24], %60 {strides = array<i32>} : memref<32x72xf32, #tpu.memory_space<vmem>>, vector<32x8xf32>,
    %c16_33 = arith.constant 16 : index
    %c0_34 = arith.constant 0 : index
    %62 = vector.load %arg12[%c16_33, %c0_34] : memref<192x8xf32, #tpu.memory_space<vmem>>, vector<32x8xf32>
    %63 = vector.extract_strided_slice %41 {offsets = [0, 4], sizes = [32, 1], strides = [1, 1]} : vector<32x9xf32> to vector<32x1xf32>
    %64 = vector.broadcast %63 : vector<32x1xf32> to vector<32x8xf32>
    %65 = arith.mulf %62, %64 : vector<32x8xf32>
    %c0_35 = arith.constant 0 : index
    %c32 = arith.constant 32 : index
    %66 = vector.load %arg13[%c0_35, %c32] : memref<32x72xf32, #tpu.memory_space<vmem>>, vector<32x8xf32>
    tpu.vector_store %arg13[%c0_35, %c32], %65 {strides = array<i32>} : memref<32x72xf32, #tpu.memory_space<vmem>>, vector<32x8xf32>,
    %c64_36 = arith.constant 64 : index
    %c0_37 = arith.constant 0 : index
    %67 = vector.load %arg12[%c64_36, %c0_37] : memref<192x8xf32, #tpu.memory_space<vmem>>, vector<32x8xf32>
    %68 = vector.extract_strided_slice %41 {offsets = [0, 5], sizes = [32, 1], strides = [1, 1]} : vector<32x9xf32> to vector<32x1xf32>
    %69 = vector.broadcast %68 : vector<32x1xf32> to vector<32x8xf32>
    %70 = arith.mulf %67, %69 : vector<32x8xf32>
    %c0_38 = arith.constant 0 : index
    %c40 = arith.constant 40 : index
    %71 = vector.load %arg13[%c0_38, %c40] : memref<32x72xf32, #tpu.memory_space<vmem>>, vector<32x8xf32>
    tpu.vector_store %arg13[%c0_38, %c40], %70 {strides = array<i32>} : memref<32x72xf32, #tpu.memory_space<vmem>>, vector<32x8xf32>,
    %c158 = arith.constant 158 : index
    %c0_39 = arith.constant 0 : index
    %72 = vector.load %arg12[%c158, %c0_39] : memref<192x8xf32, #tpu.memory_space<vmem>>, vector<32x8xf32>
    %73 = vector.extract_strided_slice %41 {offsets = [0, 6], sizes = [32, 1], strides = [1, 1]} : vector<32x9xf32> to vector<32x1xf32>
    %74 = vector.broadcast %73 : vector<32x1xf32> to vector<32x8xf32>
    %75 = arith.mulf %72, %74 : vector<32x8xf32>
    %c0_40 = arith.constant 0 : index
    %c48 = arith.constant 48 : index
    %76 = vector.load %arg13[%c0_40, %c48] : memref<32x72xf32, #tpu.memory_space<vmem>>, vector<32x8xf32>
    tpu.vector_store %arg13[%c0_40, %c48], %75 {strides = array<i32>} : memref<32x72xf32, #tpu.memory_space<vmem>>, vector<32x8xf32>,
    %c112_41 = arith.constant 112 : index
    %c0_42 = arith.constant 0 : index
    %77 = vector.load %arg12[%c112_41, %c0_42] : memref<192x8xf32, #tpu.memory_space<vmem>>, vector<32x8xf32>
    %78 = vector.extract_strided_slice %41 {offsets = [0, 7], sizes = [32, 1], strides = [1, 1]} : vector<32x9xf32> to vector<32x1xf32>
    %79 = vector.broadcast %78 : vector<32x1xf32> to vector<32x8xf32>
    %80 = arith.mulf %77, %79 : vector<32x8xf32>
    %c0_43 = arith.constant 0 : index
    %c56 = arith.constant 56 : index
    %81 = vector.load %arg13[%c0_43, %c56] : memref<32x72xf32, #tpu.memory_space<vmem>>, vector<32x8xf32>
    tpu.vector_store %arg13[%c0_43, %c56], %80 {strides = array<i32>} : memref<32x72xf32, #tpu.memory_space<vmem>>, vector<32x8xf32>,
    %c160_44 = arith.constant 160 : index
    %c0_45 = arith.constant 0 : index
    %82 = vector.load %arg12[%c160_44, %c0_45] : memref<192x8xf32, #tpu.memory_space<vmem>>, vector<32x8xf32>
    %83 = vector.extract_strided_slice %41 {offsets = [0, 8], sizes = [32, 1], strides = [1, 1]} : vector<32x9xf32> to vector<32x1xf32>
    %84 = vector.broadcast %83 : vector<32x1xf32> to vector<32x8xf32>
    %85 = arith.mulf %82, %84 : vector<32x8xf32>
    %c0_46 = arith.constant 0 : index
    %c64_47 = arith.constant 64 : index
    %86 = vector.load %arg13[%c0_46, %c64_47] : memref<32x72xf32, #tpu.memory_space<vmem>>, vector<32x8xf32>
    tpu.vector_store %arg13[%c0_46, %c64_47], %85 {strides = array<i32>} : memref<32x72xf32, #tpu.memory_space<vmem>>, vector<32x8xf32>,
    %c0_48 = arith.constant 0 : index
    %c0_49 = arith.constant 0 : index
    %87 = vector.load %arg13[%c0_48, %c0_49] : memref<32x72xf32, #tpu.memory_space<vmem>>, vector<32x72xf32>
    %c0_50 = arith.constant 0 : index
    %c0_51 = arith.constant 0 : index
    %88 = vector.load %arg5[%c0_50, %c0_51] : memref<72x16xf32, #tpu.memory_space<vmem>>, vector<72x16xf32>
    %cst_52 = arith.constant dense<0.000000e+00> : vector<32x16xf32>
    %89 = tpu.matmul %87, %88, %cst_52 {dimension_numbers = #tpu.dot_dimension_numbers<[1], [0], [0], [1], [0, 0, 1, 1], [], []>} : vector<32x72xf32>, vector<72x16xf32>, vector<32x16xf32> -> vector<32x16xf32>
    %cst_53 = arith.constant dense<0.000000e+00> : vector<16xf32>
    %90 = vector.multi_reduction <add>, %89, %cst_53 [0] : vector<32x16xf32> to vector<16xf32>
    %91 = vector.shape_cast %90 : vector<16xf32> to vector<1x16xf32>
    %cst_54 = arith.constant 3.125000e-02 : f32
    %92 = vector.broadcast %cst_54 : f32 to vector<1x16xf32>
    %93 = arith.mulf %91, %92 : vector<1x16xf32>
    %94 = arith.mulf %89, %89 : vector<32x16xf32>
    %cst_55 = arith.constant dense<0.000000e+00> : vector<16xf32>
    %95 = vector.multi_reduction <add>, %94, %cst_55 [0] : vector<32x16xf32> to vector<16xf32>
    %96 = vector.shape_cast %95 : vector<16xf32> to vector<1x16xf32>
    %cst_56 = arith.constant 3.125000e-02 : f32
    %97 = vector.broadcast %cst_56 : f32 to vector<1x16xf32>
    %98 = arith.mulf %96, %97 : vector<1x16xf32>
    %99 = arith.mulf %93, %93 : vector<1x16xf32>
    %100 = arith.subf %98, %99 : vector<1x16xf32>
    %c0_57 = arith.constant 0 : index
    %c0_58 = arith.constant 0 : index
    %101 = vector.load %arg6[%c0_57, %c0_58] : memref<1x16xf32, #tpu.memory_space<vmem>>, vector<1x16xf32>
    %cst_59 = arith.constant 9.99999974E-6 : f32
    %102 = vector.broadcast %cst_59 : f32 to vector<1x16xf32>
    %103 = arith.addf %100, %102 : vector<1x16xf32>
    %104 = math.rsqrt %103 : vector<1x16xf32>
    %105 = arith.mulf %101, %104 : vector<1x16xf32>
    %c0_60 = arith.constant 0 : index
    %c0_61 = arith.constant 0 : index
    %106 = vector.load %arg7[%c0_60, %c0_61] : memref<1x16xf32, #tpu.memory_space<vmem>>, vector<1x16xf32>
    %107 = arith.mulf %93, %105 : vector<1x16xf32>
    %108 = arith.subf %106, %107 : vector<1x16xf32>
    %109 = vector.broadcast %105 : vector<1x16xf32> to vector<32x16xf32>
    %110 = arith.mulf %89, %109 : vector<32x16xf32>
    %111 = vector.broadcast %108 : vector<1x16xf32> to vector<32x16xf32>
    %112 = arith.addf %110, %111 : vector<32x16xf32>
    %cst_62 = arith.constant 0.000000e+00 : f32
    %113 = vector.broadcast %cst_62 : f32 to vector<32x16xf32>
    %114 = arith.cmpf oge, %112, %113 : vector<32x16xf32>
    %cst_63 = arith.constant 0.00999999977 : f32
    %115 = vector.broadcast %cst_63 : f32 to vector<32x16xf32>
    %116 = arith.mulf %115, %112 : vector<32x16xf32>
    %117 = arith.select %114, %112, %116 : vector<32x16xi1>, vector<32x16xf32>
    %118 = vector.extract_strided_slice %117 {offsets = [0, 0], sizes = [2, 16], strides = [1, 1]} : vector<32x16xf32> to vector<2x16xf32>
    %c0_64 = arith.constant 0 : index
    %c0_65 = arith.constant 0 : index
    %119 = vector.load %arg14[%c0_64, %c0_65] : memref<2x256xf32, #tpu.memory_space<vmem>>, vector<2x16xf32>
    tpu.vector_store %arg14[%c0_64, %c0_65], %118 {strides = array<i32>} : memref<2x256xf32, #tpu.memory_space<vmem>>, vector<2x16xf32>,
    %120 = vector.extract_strided_slice %117 {offsets = [2, 0], sizes = [2, 16], strides = [1, 1]} : vector<32x16xf32> to vector<2x16xf32>
    %c0_66 = arith.constant 0 : index
    %c16_67 = arith.constant 16 : index
    %121 = vector.load %arg14[%c0_66, %c16_67] : memref<2x256xf32, #tpu.memory_space<vmem>>, vector<2x16xf32>
    tpu.vector_store %arg14[%c0_66, %c16_67], %120 {strides = array<i32>} : memref<2x256xf32, #tpu.memory_space<vmem>>, vector<2x16xf32>,
    %122 = vector.extract_strided_slice %117 {offsets = [4, 0], sizes = [2, 16], strides = [1, 1]} : vector<32x16xf32> to vector<2x16xf32>
    %c0_68 = arith.constant 0 : index
    %c32_69 = arith.constant 32 : index
    %123 = vector.load %arg14[%c0_68, %c32_69] : memref<2x256xf32, #tpu.memory_space<vmem>>, vector<2x16xf32>
    tpu.vector_store %arg14[%c0_68, %c32_69], %122 {strides = array<i32>} : memref<2x256xf32, #tpu.memory_space<vmem>>, vector<2x16xf32>,
    %124 = vector.extract_strided_slice %117 {offsets = [6, 0], sizes = [2, 16], strides = [1, 1]} : vector<32x16xf32> to vector<2x16xf32>
    %c0_70 = arith.constant 0 : index
    %c48_71 = arith.constant 48 : index
    %125 = vector.load %arg14[%c0_70, %c48_71] : memref<2x256xf32, #tpu.memory_space<vmem>>, vector<2x16xf32>
    tpu.vector_store %arg14[%c0_70, %c48_71], %124 {strides = array<i32>} : memref<2x256xf32, #tpu.memory_space<vmem>>, vector<2x16xf32>,
    %126 = vector.extract_strided_slice %117 {offsets = [8, 0], sizes = [2, 16], strides = [1, 1]} : vector<32x16xf32> to vector<2x16xf32>
    %c0_72 = arith.constant 0 : index
    %c64_73 = arith.constant 64 : index
    %127 = vector.load %arg14[%c0_72, %c64_73] : memref<2x256xf32, #tpu.memory_space<vmem>>, vector<2x16xf32>
    tpu.vector_store %arg14[%c0_72, %c64_73], %126 {strides = array<i32>} : memref<2x256xf32, #tpu.memory_space<vmem>>, vector<2x16xf32>,
    %128 = vector.extract_strided_slice %117 {offsets = [10, 0], sizes = [2, 16], strides = [1, 1]} : vector<32x16xf32> to vector<2x16xf32>
    %c0_74 = arith.constant 0 : index
    %c80 = arith.constant 80 : index
    %129 = vector.load %arg14[%c0_74, %c80] : memref<2x256xf32, #tpu.memory_space<vmem>>, vector<2x16xf32>
    tpu.vector_store %arg14[%c0_74, %c80], %128 {strides = array<i32>} : memref<2x256xf32, #tpu.memory_space<vmem>>, vector<2x16xf32>,
    %130 = vector.extract_strided_slice %117 {offsets = [12, 0], sizes = [2, 16], strides = [1, 1]} : vector<32x16xf32> to vector<2x16xf32>
    %c0_75 = arith.constant 0 : index
    %c96 = arith.constant 96 : index
    %131 = vector.load %arg14[%c0_75, %c96] : memref<2x256xf32, #tpu.memory_space<vmem>>, vector<2x16xf32>
    tpu.vector_store %arg14[%c0_75, %c96], %130 {strides = array<i32>} : memref<2x256xf32, #tpu.memory_space<vmem>>, vector<2x16xf32>,
    %132 = vector.extract_strided_slice %117 {offsets = [14, 0], sizes = [2, 16], strides = [1, 1]} : vector<32x16xf32> to vector<2x16xf32>
    %c0_76 = arith.constant 0 : index
    %c112_77 = arith.constant 112 : index
    %133 = vector.load %arg14[%c0_76, %c112_77] : memref<2x256xf32, #tpu.memory_space<vmem>>, vector<2x16xf32>
    tpu.vector_store %arg14[%c0_76, %c112_77], %132 {strides = array<i32>} : memref<2x256xf32, #tpu.memory_space<vmem>>, vector<2x16xf32>,
    %134 = vector.extract_strided_slice %117 {offsets = [16, 0], sizes = [2, 16], strides = [1, 1]} : vector<32x16xf32> to vector<2x16xf32>
    %c0_78 = arith.constant 0 : index
    %c128 = arith.constant 128 : index
    %135 = vector.load %arg14[%c0_78, %c128] : memref<2x256xf32, #tpu.memory_space<vmem>>, vector<2x16xf32>
    tpu.vector_store %arg14[%c0_78, %c128], %134 {strides = array<i32>} : memref<2x256xf32, #tpu.memory_space<vmem>>, vector<2x16xf32>,
    %136 = vector.extract_strided_slice %117 {offsets = [18, 0], sizes = [2, 16], strides = [1, 1]} : vector<32x16xf32> to vector<2x16xf32>
    %c0_79 = arith.constant 0 : index
    %c144 = arith.constant 144 : index
    %137 = vector.load %arg14[%c0_79, %c144] : memref<2x256xf32, #tpu.memory_space<vmem>>, vector<2x16xf32>
    tpu.vector_store %arg14[%c0_79, %c144], %136 {strides = array<i32>} : memref<2x256xf32, #tpu.memory_space<vmem>>, vector<2x16xf32>,
    %138 = vector.extract_strided_slice %117 {offsets = [20, 0], sizes = [2, 16], strides = [1, 1]} : vector<32x16xf32> to vector<2x16xf32>
    %c0_80 = arith.constant 0 : index
    %c160_81 = arith.constant 160 : index
    %139 = vector.load %arg14[%c0_80, %c160_81] : memref<2x256xf32, #tpu.memory_space<vmem>>, vector<2x16xf32>
    tpu.vector_store %arg14[%c0_80, %c160_81], %138 {strides = array<i32>} : memref<2x256xf32, #tpu.memory_space<vmem>>, vector<2x16xf32>,
    %140 = vector.extract_strided_slice %117 {offsets = [22, 0], sizes = [2, 16], strides = [1, 1]} : vector<32x16xf32> to vector<2x16xf32>
    %c0_82 = arith.constant 0 : index
    %c176 = arith.constant 176 : index
    %141 = vector.load %arg14[%c0_82, %c176] : memref<2x256xf32, #tpu.memory_space<vmem>>, vector<2x16xf32>
    tpu.vector_store %arg14[%c0_82, %c176], %140 {strides = array<i32>} : memref<2x256xf32, #tpu.memory_space<vmem>>, vector<2x16xf32>,
    %142 = vector.extract_strided_slice %117 {offsets = [24, 0], sizes = [2, 16], strides = [1, 1]} : vector<32x16xf32> to vector<2x16xf32>
    %c0_83 = arith.constant 0 : index
    %c192 = arith.constant 192 : index
    %143 = vector.load %arg14[%c0_83, %c192] : memref<2x256xf32, #tpu.memory_space<vmem>>, vector<2x16xf32>
    tpu.vector_store %arg14[%c0_83, %c192], %142 {strides = array<i32>} : memref<2x256xf32, #tpu.memory_space<vmem>>, vector<2x16xf32>,
    %144 = vector.extract_strided_slice %117 {offsets = [26, 0], sizes = [2, 16], strides = [1, 1]} : vector<32x16xf32> to vector<2x16xf32>
    %c0_84 = arith.constant 0 : index
    %c208 = arith.constant 208 : index
    %145 = vector.load %arg14[%c0_84, %c208] : memref<2x256xf32, #tpu.memory_space<vmem>>, vector<2x16xf32>
    tpu.vector_store %arg14[%c0_84, %c208], %144 {strides = array<i32>} : memref<2x256xf32, #tpu.memory_space<vmem>>, vector<2x16xf32>,
    %146 = vector.extract_strided_slice %117 {offsets = [28, 0], sizes = [2, 16], strides = [1, 1]} : vector<32x16xf32> to vector<2x16xf32>
    %c0_85 = arith.constant 0 : index
    %c224 = arith.constant 224 : index
    %147 = vector.load %arg14[%c0_85, %c224] : memref<2x256xf32, #tpu.memory_space<vmem>>, vector<2x16xf32>
    tpu.vector_store %arg14[%c0_85, %c224], %146 {strides = array<i32>} : memref<2x256xf32, #tpu.memory_space<vmem>>, vector<2x16xf32>,
    %148 = vector.extract_strided_slice %117 {offsets = [30, 0], sizes = [2, 16], strides = [1, 1]} : vector<32x16xf32> to vector<2x16xf32>
    %c0_86 = arith.constant 0 : index
    %c240 = arith.constant 240 : index
    %149 = vector.load %arg14[%c0_86, %c240] : memref<2x256xf32, #tpu.memory_space<vmem>>, vector<2x16xf32>
    tpu.vector_store %arg14[%c0_86, %c240], %148 {strides = array<i32>} : memref<2x256xf32, #tpu.memory_space<vmem>>, vector<2x16xf32>,
    %c0_87 = arith.constant 0 : index
    %c0_88 = arith.constant 0 : index
    %150 = vector.load %arg14[%c0_87, %c0_88] : memref<2x256xf32, #tpu.memory_space<vmem>>, vector<2x256xf32>
    %c0_89 = arith.constant 0 : index
    %c0_90 = arith.constant 0 : index
    %151 = vector.load %arg9[%c0_89, %c0_90] : memref<256x64xf32, #tpu.memory_space<vmem>>, vector<256x64xf32>
    %cst_91 = arith.constant dense<0.000000e+00> : vector<2x64xf32>
    %152 = tpu.matmul %150, %151, %cst_91 {dimension_numbers = #tpu.dot_dimension_numbers<[1], [0], [0], [1], [0, 0, 1, 1], [], []>} : vector<2x256xf32>, vector<256x64xf32>, vector<2x64xf32> -> vector<2x64xf32>
    %c0_92 = arith.constant 0 : index
    %c0_93 = arith.constant 0 : index
    %153 = vector.load %arg10[%c0_92, %c0_93] : memref<1x64xf32, #tpu.memory_space<vmem>>, vector<1x64xf32>
    %154 = vector.broadcast %153 : vector<1x64xf32> to vector<2x64xf32>
    %155 = arith.addf %152, %154 : vector<2x64xf32>
    %c0_94 = arith.constant 0 : index
    %c0_95 = arith.constant 0 : index
    %156 = vector.load %arg11[%c0_94, %c0_95] : memref<2x64xf32, #tpu.memory_space<vmem>>, vector<2x64xf32>
    tpu.vector_store %arg11[%c0_94, %c0_95], %155 {strides = array<i32>} : memref<2x64xf32, #tpu.memory_space<vmem>>, vector<2x64xf32>,
    return
  }
  func.func @transform_0(%arg0: i32) -> (i32, i32) {
    %c0_i32 = arith.constant 0 : i32
    %c0_i32_0 = arith.constant 0 : i32
    %c0_i32_1 = arith.constant 0 : i32
    return %c0_i32, %c0_i32_0 : i32, i32
  }
  func.func @transform_1(%arg0: i32) -> (i32, i32) {
    %c0_i32 = arith.constant 0 : i32
    %c0_i32_0 = arith.constant 0 : i32
    %c0_i32_1 = arith.constant 0 : i32
    return %c0_i32, %c0_i32_0 : i32, i32
  }
  func.func @transform_2(%arg0: i32) -> (i32, i32) {
    %c0_i32 = arith.constant 0 : i32
    %c0_i32_0 = arith.constant 0 : i32
    %c0_i32_1 = arith.constant 0 : i32
    return %c0_i32, %c0_i32_0 : i32, i32
  }
  func.func @transform_3(%arg0: i32) -> (i32, i32) {
    %c0_i32 = arith.constant 0 : i32
    %c0_i32_0 = arith.constant 0 : i32
    %c0_i32_1 = arith.constant 0 : i32
    return %c0_i32, %c0_i32_0 : i32, i32
  }
  func.func @transform_4(%arg0: i32) -> (i32, i32) {
    %c0_i32 = arith.constant 0 : i32
    %c0_i32_0 = arith.constant 0 : i32
    %c0_i32_1 = arith.constant 0 : i32
    return %c0_i32, %c0_i32_0 : i32, i32
  }
  func.func @transform_5(%arg0: i32) -> (i32, i32) {
    %c0_i32 = arith.constant 0 : i32
    %c0_i32_0 = arith.constant 0 : i32
    %c0_i32_1 = arith.constant 0 : i32
    return %c0_i32, %c0_i32_0 : i32, i32
  }
  func.func @transform_6(%arg0: i32) -> (i32, i32) {
    %c0_i32 = arith.constant 0 : i32
    %c0_i32_0 = arith.constant 0 : i32
    %c0_i32_1 = arith.constant 0 : i32
    return %c0_i32, %c0_i32_0 : i32, i32
  }
  func.func @transform_7(%arg0: i32) -> (i32, i32) {
    %c0_i32 = arith.constant 0 : i32
    %c0_i32_0 = arith.constant 0 : i32
    %c0_i32_1 = arith.constant 0 : i32
    return %c0_i32, %c0_i32_0 : i32, i32
  }
  func.func @transform_8(%arg0: i32) -> (i32, i32) {
    %c0_i32 = arith.constant 0 : i32
    %c0_i32_0 = arith.constant 0 : i32
    %c0_i32_1 = arith.constant 0 : i32
    return %c0_i32, %c0_i32_0 : i32, i32
  }
  func.func @transform_9(%arg0: i32) -> (i32, i32) {
    %c0_i32 = arith.constant 0 : i32
    %c0_i32_0 = arith.constant 0 : i32
    %c0_i32_1 = arith.constant 0 : i32
    return %c0_i32, %c0_i32_0 : i32, i32
  }
  func.func @transform_10(%arg0: i32) -> (i32, i32) {
    %c0_i32 = arith.constant 0 : i32
    %c0_i32_0 = arith.constant 0 : i32
    %c0_i32_1 = arith.constant 0 : i32
    return %c0_i32, %c0_i32_0 : i32, i32
  }
}

</mosaic_0001>

<llo_original>
// kernel: _lambda_.1
$region0: #{_lambda_.1}
  #allocation0 [shape = 'u32[]', space=smem, size = 0x4, offset = 0x4, fixed_abs, tag = 'smem constant byte address 0x4 - core index']
  #allocation1 [shape = 'u32[144,128]{1,0:T(1,128)}', space=vmem, size = 0x12000, scoped, tag = 'internal scratch']
  #allocation2 [shape = 'f32[192,8]{1,0:T(8,128)}', space=vmem, size = 0x18000, scoped, tag = 'scratch operand']
  #allocation3 [shape = 'f32[32,72]{1,0:T(8,128)}', space=vmem, size = 0x4000, scoped, tag = 'scratch operand']
  #allocation4 [shape = 'f32[2,256]{1,0:T(2,128)}', space=vmem, size = 0x800, scoped, tag = 'scratch operand']
  %s0 = inlined_call_operand.vmem [shape: f32[128,36], index: 0, kind: input, shape index: {}]
  %s1 = inlined_call_operand.vmem [shape: f32[36,8], index: 1, kind: input, shape index: {}]
  %s2 = inlined_call_operand.vmem [shape: f32[1,8], index: 2, kind: input, shape index: {}]
  %s3 = inlined_call_operand.vmem [shape: f32[1,8], index: 3, kind: input, shape index: {}]
  %s4 = inlined_call_operand.vmem [shape: f32[72,16], index: 4, kind: input, shape index: {}]
  %s5 = inlined_call_operand.vmem [shape: f32[1,16], index: 5, kind: input, shape index: {}]
  %s6 = inlined_call_operand.vmem [shape: f32[1,16], index: 6, kind: input, shape index: {}]
  %s7 = inlined_call_operand.vmem [shape: f32[32,9], index: 7, kind: input, shape index: {}]
  %s8 = inlined_call_operand.vmem [shape: f32[256,64], index: 8, kind: input, shape index: {}]
  %s9 = inlined_call_operand.vmem [shape: f32[1,64], index: 9, kind: input, shape index: {}]
  %s10 = inlined_call_operand.vmem [shape: f32[2,64], index: 10, kind: output, shape index: {}]
  %s11 = sld [smem:[#allocation0]]
  $region50: #{_lambda_.1} parent=0
    _
  %s13 = ssub.s32 1, %s11
  %s14 = scalar_select 0, %s13, %s11
  // Predicated region
  $region2: #{_lambda_.1} parent=0 // pred_check
    _
  $region3: #{_lambda_.1} parent=0 // pred_check_branch
    %16 = sbr.rel (0) target = $region5
  $region4: #{_lambda_.1} parent=0 // pred_region
    _
  $region5: #{_lambda_.1} parent=0 // pred_fallthru
    _
  // Predicated region
  $region6: #{_lambda_.1} parent=0 // pred_check
    _
  $region7: #{_lambda_.1} parent=0 // pred_check_branch
    %18 = sbr.rel (0) target = $region9
  $region8: #{_lambda_.1} parent=0 // pred_region
    _
  $region9: #{_lambda_.1} parent=0 // pred_fallthru
    _
  // Predicated region
  $region10: #{_lambda_.1} parent=0 // pred_check
    _
  $region11: #{_lambda_.1} parent=0 // pred_check_branch
    %20 = sbr.rel (0) target = $region13
  $region12: #{_lambda_.1} parent=0 // pred_region
    _
  $region13: #{_lambda_.1} parent=0 // pred_fallthru
    _
  // Predicated region
  $region14: #{_lambda_.1} parent=0 // pred_check
    _
  $region15: #{_lambda_.1} parent=0 // pred_check_branch
    %22 = sbr.rel (0) target = $region17
  $region16: #{_lambda_.1} parent=0 // pred_region
    _
  $region17: #{_lambda_.1} parent=0 // pred_fallthru
    _
  // Predicated region
  $region18: #{_lambda_.1} parent=0 // pred_check
    _
  $region19: #{_lambda_.1} parent=0 // pred_check_branch
    %24 = sbr.rel (0) target = $region21
  $region20: #{_lambda_.1} parent=0 // pred_region
    _
  $region21: #{_lambda_.1} parent=0 // pred_fallthru
    _
  // Predicated region
  $region22: #{_lambda_.1} parent=0 // pred_check
    _
  $region23: #{_lambda_.1} parent=0 // pred_check_branch
    %26 = sbr.rel (0) target = $region25
  $region24: #{_lambda_.1} parent=0 // pred_region
    _
  $region25: #{_lambda_.1} parent=0 // pred_fallthru
    _
  // Predicated region
  $region26: #{_lambda_.1} parent=0 // pred_check
    _
  $region27: #{_lambda_.1} parent=0 // pred_check_branch
    %28 = sbr.rel (0) target = $region29
  $region28: #{_lambda_.1} parent=0 // pred_region
    _
  $region29: #{_lambda_.1} parent=0 // pred_fallthru
    _
  // Predicated region
  $region30: #{_lambda_.1} parent=0 // pred_check
    _
  $region31: #{_lambda_.1} parent=0 // pred_check_branch
    %30 = sbr.rel (0) target = $region33
  $region32: #{_lambda_.1} parent=0 // pred_region
    _
  $region33: #{_lambda_.1} parent=0 // pred_fallthru
    _
  // Predicated region
  $region34: #{_lambda_.1} parent=0 // pred_check
    _
  $region35: #{_lambda_.1} parent=0 // pred_check_branch
    %32 = sbr.rel (0) target = $region37
  $region36: #{_lambda_.1} parent=0 // pred_region
    _
  $region37: #{_lambda_.1} parent=0 // pred_fallthru
    _
  // Predicated region
  $region38: #{_lambda_.1} parent=0 // pred_check
    _
  $region39: #{_lambda_.1} parent=0 // pred_check_branch
    %34 = sbr.rel (0) target = $region41
  $region40: #{_lambda_.1} parent=0 // pred_region
    _
  $region41: #{_lambda_.1} parent=0 // pred_fallthru
    _
  %v35 = vld [vmem:[%s0] sm:$0xff]
  %v36 = vld [vmem:[%s0 + $0x8] sm:$0xff]
  %v37 = vld [vmem:[%s0 + $0x10] sm:$0xff]
  %v38 = vld [vmem:[%s0 + $0x18] sm:$0xff]
  %v39 = vld [vmem:[%s0 + $0x20] sm:$0xff]
  %v40 = vld [vmem:[%s0 + $0x28] sm:$0xff]
  %v41 = vld [vmem:[%s0 + $0x30] sm:$0xff]
  %v42 = vld [vmem:[%s0 + $0x38] sm:$0xff]
  %v43 = vld [vmem:[%s0 + $0x40] sm:$0xff]
  %v44 = vld [vmem:[%s0 + $0x48] sm:$0xff]
  %v45 = vld [vmem:[%s0 + $0x50] sm:$0xff]
  %v46 = vld [vmem:[%s0 + $0x58] sm:$0xff]
  %v47 = vld [vmem:[%s0 + $0x60] sm:$0xff]
  %v48 = vld [vmem:[%s0 + $0x68] sm:$0xff]
  %v49 = vld [vmem:[%s0 + $0x70] sm:$0xff]
  %v50 = vld [vmem:[%s0 + $0x78] sm:$0xff]
  %v51 = vld [vmem:[%s1] sm:$0xff]
  %v52 = vld [vmem:[%s1 + $0x8] sm:$0xff]
  %v53 = vld [vmem:[%s1 + $0x10] sm:$0xff]
  %v54 = vld [vmem:[%s1 + $0x18] sm:$0xff]
  %v55 = vld [vmem:[%s1 + $0x20] sm:$0xf]
  %vm56 = vcmask 293888
  %v58 = vsel %vm56, %v35, 0
  %v61 = vsel %vm56, %v36, 0
  %v64 = vsel %vm56, %v37, 0
  %v67 = vsel %vm56, %v38, 0
  %v70 = vsel %vm56, %v39, 0
  %v73 = vsel %vm56, %v40, 0
  %v76 = vsel %vm56, %v41, 0
  %v79 = vsel %vm56, %v42, 0
  %v82 = vsel %vm56, %v43, 0
  %v85 = vsel %vm56, %v44, 0
  %v88 = vsel %vm56, %v45, 0
  %v91 = vsel %vm56, %v46, 0
  %v94 = vsel %vm56, %v47, 0
  %v97 = vsel %vm56, %v48, 0
  %v100 = vsel %vm56, %v49, 0
  %v103 = vsel %vm56, %v50, 0
  %vm105 = vcmask 1043456
  %v107 = vsel %vm105, %v55, 0
  %109 = vmatprep.subr.mxu0 0.0
  %110 = vmatpush1.msra.mxu0 %v51
  %111 = vmatprep.subr.mxu0 0.0
  %112 = vmatpush1.msra.mxu0 %v52
  %113 = vmatprep.subr.mxu0 0.0
  %114 = vmatpush1.msra.mxu0 %v53
  %115 = vmatprep.subr.mxu0 0.0
  %116 = vmatpush1.msra.mxu0 %v54
  %117 = vmatprep.subr.mxu0 0.0
  %118 = vmatpush1.msra.mxu0 %v107
  %119 = vmatprep.subr.mxu0 0.0
  %120 = vmatpush1.msra.mxu0 0.0
  %121 = vmatprep.subr.mxu0 0.0
  %122 = vmatpush1.msra.mxu0 0.0
  %123 = vmatprep.subr.mxu0 0.0
  %124 = vmatpush1.msra.mxu0 0.0
  %125 = vmatprep.subr.mxu0 0.0
  %126 = vmatpush1.msra.mxu0 0.0
  %127 = vmatprep.subr.mxu0 0.0
  %128 = vmatpush1.msra.mxu0 0.0
  %129 = vmatprep.subr.mxu0 0.0
  %130 = vmatpush1.msra.mxu0 0.0
  %131 = vmatprep.subr.mxu0 0.0
  %132 = vmatpush1.msra.mxu0 0.0
  %133 = vmatprep.subr.mxu0 0.0
  %134 = vmatpush1.msra.mxu0 0.0
  %135 = vmatprep.subr.mxu0 0.0
  %136 = vmatpush1.msra.mxu0 0.0
  %137 = vmatprep.subr.mxu0 0.0
  %138 = vmatpush1.msra.mxu0 0.0
  %139 = vmatprep.subr.mxu0 0.0
  %140 = vmatpush1.msra.mxu0 0.0
  %141 = vmatprep.subr.mxu0 0.0
  %142 = vmatpush1.msra.mxu0 0.0
  %143 = vmatprep.subr.mxu0 0.0
  %144 = vmatpush1.msra.mxu0 0.0
  %145 = vmatprep.subr.mxu0 0.0
  %146 = vmatpush1.msra.mxu0 0.0
  %147 = vmatprep.subr.mxu0 0.0
  %148 = vmatpush1.msra.mxu0 0.0
  %149 = vmatprep.subr.mxu0 0.0
  %150 = vmatpush1.msra.mxu0 0.0
  %151 = vmatprep.subr.mxu0 0.0
  %152 = vmatpush1.msra.mxu0 0.0
  %153 = vmatprep.subr.mxu0 0.0
  %154 = vmatpush1.msra.mxu0 0.0
  %155 = vmatprep.subr.mxu0 0.0
  %156 = vmatpush1.msra.mxu0 0.0
  %157 = vmatprep.subr.mxu0 0.0
  %158 = vmatpush1.msra.mxu0 0.0
  %159 = vmatprep.subr.mxu0 0.0
  %160 = vmatpush1.msra.mxu0 0.0
  %161 = vmatprep.subr.mxu0 0.0
  %162 = vmatpush1.msra.mxu0 0.0
  %163 = vmatprep.subr.mxu0 0.0
  %164 = vmatpush1.msra.mxu0 0.0
  %165 = vmatprep.subr.mxu0 0.0
  %166 = vmatpush1.msra.mxu0 0.0
  %167 = vmatprep.subr.mxu0 0.0
  %168 = vmatpush1.msra.mxu0 0.0
  %169 = vmatprep.subr.mxu0 0.0
  %170 = vmatpush1.msra.mxu0 0.0
  %171 = vmatprep.subr.mxu0 0.0
  %172 = vmatpush1.msra.mxu0 0.0
  %173 = vmatprep.mubr.f32.mxu0 0.0
  %174 = vmatmul.mubr.f32.gmra.mrb[0].mxu0 %v58
  %v175 = vpop.f32.mrb[0].mxu0
  %v176 = vadd.f32 0.0, %v175
  %v177 = vpop.f32.mrb[0].mxu0
  %178 = vmatprep.mubr.f32.mxu0 0.0
  %179 = vmatmul.mubr.f32.gmra.mrb[0].mxu0 %v61
  %v180 = vpop.f32.mrb[0].mxu0
  %v181 = vadd.f32 0.0, %v180
  %v182 = vpop.f32.mrb[0].mxu0
  %183 = vmatprep.mubr.f32.mxu0 0.0
  %184 = vmatmul.mubr.f32.gmra.mrb[0].mxu0 %v64
  %v185 = vpop.f32.mrb[0].mxu0
  %v186 = vadd.f32 0.0, %v185
  %v187 = vpop.f32.mrb[0].mxu0
  %188 = vmatprep.mubr.f32.mxu0 0.0
  %189 = vmatmul.mubr.f32.gmra.mrb[0].mxu0 %v67
  %v190 = vpop.f32.mrb[0].mxu0
  %v191 = vadd.f32 0.0, %v190
  %v192 = vpop.f32.mrb[0].mxu0
  %193 = vmatprep.mubr.f32.mxu0 0.0
  %194 = vmatmul.mubr.f32.gmra.mrb[0].mxu0 %v70
  %v195 = vpop.f32.mrb[0].mxu0
  %v196 = vadd.f32 0.0, %v195
  %v197 = vpop.f32.mrb[0].mxu0
  %198 = vmatprep.mubr.f32.mxu0 0.0
  %199 = vmatmul.mubr.f32.gmra.mrb[0].mxu0 %v73
  %v200 = vpop.f32.mrb[0].mxu0
  %v201 = vadd.f32 0.0, %v200
  %v202 = vpop.f32.mrb[0].mxu0
  %203 = vmatprep.mubr.f32.mxu0 0.0
  %204 = vmatmul.mubr.f32.gmra.mrb[0].mxu0 %v76
  %v205 = vpop.f32.mrb[0].mxu0
  %v206 = vadd.f32 0.0, %v205
  %v207 = vpop.f32.mrb[0].mxu0
  %208 = vmatprep.mubr.f32.mxu0 0.0
  %209 = vmatmul.mubr.f32.gmra.mrb[0].mxu0 %v79
  %v210 = vpop.f32.mrb[0].mxu0
  %v211 = vadd.f32 0.0, %v210
  %v212 = vpop.f32.mrb[0].mxu0
  %213 = vmatprep.mubr.f32.mxu0 0.0
  %214 = vmatmul.mubr.f32.gmra.mrb[0].mxu0 %v82
  %v215 = vpop.f32.mrb[0].mxu0
  %v216 = vadd.f32 0.0, %v215
  %v217 = vpop.f32.mrb[0].mxu0
  %218 = vmatprep.mubr.f32.mxu0 0.0
  %219 = vmatmul.mubr.f32.gmra.mrb[0].mxu0 %v85
  %v220 = vpop.f32.mrb[0].mxu0
  %v221 = vadd.f32 0.0, %v220
  %v222 = vpop.f32.mrb[0].mxu0
  %223 = vmatprep.mubr.f32.mxu0 0.0
  %224 = vmatmul.mubr.f32.gmra.mrb[0].mxu0 %v88
  %v225 = vpop.f32.mrb[0].mxu0
  %v226 = vadd.f32 0.0, %v225
  %v227 = vpop.f32.mrb[0].mxu0
  %228 = vmatprep.mubr.f32.mxu0 0.0
  %229 = vmatmul.mubr.f32.gmra.mrb[0].mxu0 %v91
  %v230 = vpop.f32.mrb[0].mxu0
  %v231 = vadd.f32 0.0, %v230
  %v232 = vpop.f32.mrb[0].mxu0
  %233 = vmatprep.mubr.f32.mxu0 0.0
  %234 = vmatmul.mubr.f32.gmra.mrb[0].mxu0 %v94
  %v235 = vpop.f32.mrb[0].mxu0
  %v236 = vadd.f32 0.0, %v235
  %v237 = vpop.f32.mrb[0].mxu0
  %238 = vmatprep.mubr.f32.mxu0 0.0
  %239 = vmatmul.mubr.f32.gmra.mrb[0].mxu0 %v97
  %v240 = vpop.f32.mrb[0].mxu0
  %v241 = vadd.f32 0.0, %v240
  %v242 = vpop.f32.mrb[0].mxu0
  %243 = vmatprep.mubr.f32.mxu0 0.0
  %244 = vmatmul.mubr.f32.gmra.mrb[0].mxu0 %v100
  %v245 = vpop.f32.mrb[0].mxu0
  %v246 = vadd.f32 0.0, %v245
  %v247 = vpop.f32.mrb[0].mxu0
  %248 = vmatprep.mubr.f32.mxu0 0.0
  %249 = vmatmul.mubr.f32.gmra.mrb[0].mxu0 %v103
  %v250 = vpop.f32.mrb[0].mxu0
  %v251 = vadd.f32 0.0, %v250
  %v252 = vpop.f32.mrb[0].mxu0
  %253 = vdwg.mxu0
  %vm254 = vcmask 64512
  %v255 = vsel %vm254, %v176, 0.0
  %v256 = vsel %vm254, %v181, 0.0
  %v257 = vadd.f32 %v255, %v256
  %v258 = vsel %vm254, %v186, 0.0
  %v259 = vadd.f32 %v257, %v258
  %v260 = vsel %vm254, %v191, 0.0
  %v261 = vadd.f32 %v259, %v260
  %v262 = vsel %vm254, %v196, 0.0
  %v263 = vadd.f32 %v261, %v262
  %v264 = vsel %vm254, %v201, 0.0
  %v265 = vadd.f32 %v263, %v264
  %v266 = vsel %vm254, %v206, 0.0
  %v267 = vadd.f32 %v265, %v266
  %v268 = vsel %vm254, %v211, 0.0
  %v269 = vadd.f32 %v267, %v268
  %v270 = vsel %vm254, %v216, 0.0
  %v271 = vadd.f32 %v269, %v270
  %v272 = vsel %vm254, %v221, 0.0
  %v273 = vadd.f32 %v271, %v272
  %v274 = vsel %vm254, %v226, 0.0
  %v275 = vadd.f32 %v273, %v274
  %v276 = vsel %vm254, %v231, 0.0
  %v277 = vadd.f32 %v275, %v276
  %v278 = vsel %vm254, %v236, 0.0
  %v279 = vadd.f32 %v277, %v278
  %v280 = vsel %vm254, %v241, 0.0
  %v281 = vadd.f32 %v279, %v280
  %v282 = vsel %vm254, %v246, 0.0
  %v283 = vadd.f32 %v281, %v282
  %v284 = vsel %vm254, %v251, 0.0
  %v285 = vadd.f32 %v283, %v284
  %v286 = vrot.slane %v285, 4
  %v287 = vadd.f32 %v285, %v286
  %v288 = vrot.slane %v287, 2
  %v289 = vadd.f32 %v287, %v288
  %v290 = vrot.slane %v289, 1
  %v291 = vadd.f32 %v289, %v290
  %v292 = vmul.f32 %v291, 0.0078125
  %v293 = vmul.f32 %v176, %v176
  %v294 = vmul.f32 %v181, %v181
  %v295 = vmul.f32 %v186, %v186
  %v296 = vmul.f32 %v191, %v191
  %v297 = vmul.f32 %v196, %v196
  %v298 = vmul.f32 %v201, %v201
  %v299 = vmul.f32 %v206, %v206
  %v300 = vmul.f32 %v211, %v211
  %v301 = vmul.f32 %v216, %v216
  %v302 = vmul.f32 %v221, %v221
  %v303 = vmul.f32 %v226, %v226
  %v304 = vmul.f32 %v231, %v231
  %v305 = vmul.f32 %v236, %v236
  %v306 = vmul.f32 %v241, %v241
  %v307 = vmul.f32 %v246, %v246
  %v308 = vmul.f32 %v251, %v251
  %v309 = vsel %vm254, %v293, 0.0
  %v310 = vsel %vm254, %v294, 0.0
  %v311 = vadd.f32 %v309, %v310
  %v312 = vsel %vm254, %v295, 0.0
  %v313 = vadd.f32 %v311, %v312
  %v314 = vsel %vm254, %v296, 0.0
  %v315 = vadd.f32 %v313, %v314
  %v316 = vsel %vm254, %v297, 0.0
  %v317 = vadd.f32 %v315, %v316
  %v318 = vsel %vm254, %v298, 0.0
  %v319 = vadd.f32 %v317, %v318
  %v320 = vsel %vm254, %v299, 0.0
  %v321 = vadd.f32 %v319, %v320
  %v322 = vsel %vm254, %v300, 0.0
  %v323 = vadd.f32 %v321, %v322
  %v324 = vsel %vm254, %v301, 0.0
  %v325 = vadd.f32 %v323, %v324
  %v326 = vsel %vm254, %v302, 0.0
  %v327 = vadd.f32 %v325, %v326
  %v328 = vsel %vm254, %v303, 0.0
  %v329 = vadd.f32 %v327, %v328
  %v330 = vsel %vm254, %v304, 0.0
  %v331 = vadd.f32 %v329, %v330
  %v332 = vsel %vm254, %v305, 0.0
  %v333 = vadd.f32 %v331, %v332
  %v334 = vsel %vm254, %v306, 0.0
  %v335 = vadd.f32 %v333, %v334
  %v336 = vsel %vm254, %v307, 0.0
  %v337 = vadd.f32 %v335, %v336
  %v338 = vsel %vm254, %v308, 0.0
  %v339 = vadd.f32 %v337, %v338
  %v340 = vrot.slane %v339, 4
  %v341 = vadd.f32 %v339, %v340
  %v342 = vrot.slane %v341, 2
  %v343 = vadd.f32 %v341, %v342
  %v344 = vrot.slane %v343, 1
  %v345 = vadd.f32 %v343, %v344
  %v346 = vmul.f32 %v345, 0.0078125
  %v347 = vmul.f32 %v292, %v292
  %v348 = vsub.f32 %v346, %v347
  %v349 = vld [vmem:[%s2] sm:$0x1]
  %v350 = vadd.f32 %v348, 1e-05
  %v351 = vrsqrt.pop %v350
  %v352 = vmul.f32 %v349, %v351
  %v353 = vld [vmem:[%s3] sm:$0x1]
  %v354 = vmul.f32 %v292, %v352
  %v355 = vsub.f32 %v353, %v354
  %v357 = vlaneseq
  %v358 = vshrl.u32 %v357, 7
  %v359 = vsub.s32 0, %v358
  %v360 = vrot.slane %v352, %v359
  %v362 = vmul.f32 %v176, %v360
  %v363 = vmul.f32 %v181, %v360
  %v364 = vmul.f32 %v186, %v360
  %v365 = vmul.f32 %v191, %v360
  %v366 = vmul.f32 %v196, %v360
  %v367 = vmul.f32 %v201, %v360
  %v368 = vmul.f32 %v206, %v360
  %v369 = vmul.f32 %v211, %v360
  %v370 = vmul.f32 %v216, %v360
  %v371 = vmul.f32 %v221, %v360
  %v372 = vmul.f32 %v226, %v360
  %v373 = vmul.f32 %v231, %v360
  %v374 = vmul.f32 %v236, %v360
  %v375 = vmul.f32 %v241, %v360
  %v376 = vmul.f32 %v246, %v360
  %v377 = vmul.f32 %v251, %v360
  %v379 = vlaneseq
  %v380 = vshrl.u32 %v379, 7
  %v381 = vsub.s32 0, %v380
  %v382 = vrot.slane %v355, %v381
  %v384 = vadd.f32 %v362, %v382
  %v385 = vadd.f32 %v363, %v382
  %v386 = vadd.f32 %v364, %v382
  %v387 = vadd.f32 %v365, %v382
  %v388 = vadd.f32 %v366, %v382
  %v389 = vadd.f32 %v367, %v382
  %v390 = vadd.f32 %v368, %v382
  %v391 = vadd.f32 %v369, %v382
  %v392 = vadd.f32 %v370, %v382
  %v393 = vadd.f32 %v371, %v382
  %v394 = vadd.f32 %v372, %v382
  %v395 = vadd.f32 %v373, %v382
  %v396 = vadd.f32 %v374, %v382
  %v397 = vadd.f32 %v375, %v382
  %v398 = vadd.f32 %v376, %v382
  %v399 = vadd.f32 %v377, %v382
  %vm400 = vcmp.ge.f32.partialorder %v384, 0.0
  %vm401 = vcmp.ge.f32.partialorder %v385, 0.0
  %vm402 = vcmp.ge.f32.partialorder %v386, 0.0
  %vm403 = vcmp.ge.f32.partialorder %v387, 0.0
  %vm404 = vcmp.ge.f32.partialorder %v388, 0.0
  %vm405 = vcmp.ge.f32.partialorder %v389, 0.0
  %vm406 = vcmp.ge.f32.partialorder %v390, 0.0
  %vm407 = vcmp.ge.f32.partialorder %v391, 0.0
  %vm408 = vcmp.ge.f32.partialorder %v392, 0.0
  %vm409 = vcmp.ge.f32.partialorder %v393, 0.0
  %vm410 = vcmp.ge.f32.partialorder %v394, 0.0
  %vm411 = vcmp.ge.f32.partialorder %v395, 0.0
  %vm412 = vcmp.ge.f32.partialorder %v396, 0.0
  %vm413 = vcmp.ge.f32.partialorder %v397, 0.0
  %vm414 = vcmp.ge.f32.partialorder %v398, 0.0
  %vm415 = vcmp.ge.f32.partialorder %v399, 0.0
  %v416 = vmul.f32 %v384, 0.01
  %v417 = vmul.f32 %v385, 0.01
  %v418 = vmul.f32 %v386, 0.01
  %v419 = vmul.f32 %v387, 0.01
  %v420 = vmul.f32 %v388, 0.01
  %v421 = vmul.f32 %v389, 0.01
  %v422 = vmul.f32 %v390, 0.01
  %v423 = vmul.f32 %v391, 0.01
  %v424 = vmul.f32 %v392, 0.01
  %v425 = vmul.f32 %v393, 0.01
  %v426 = vmul.f32 %v394, 0.01
  %v427 = vmul.f32 %v395, 0.01
  %v428 = vmul.f32 %v396, 0.01
  %v429 = vmul.f32 %v397, 0.01
  %v430 = vmul.f32 %v398, 0.01
  %v431 = vmul.f32 %v399, 0.01
  %v432 = vsel %vm400, %v384, %v416
  %v433 = vsel %vm401, %v385, %v417
  %v434 = vsel %vm402, %v386, %v418
  %v435 = vsel %vm403, %v387, %v419
  %v436 = vsel %vm404, %v388, %v420
  %v437 = vsel %vm405, %v389, %v421
  %v438 = vsel %vm406, %v390, %v422
  %v439 = vsel %vm407, %v391, %v423
  %v440 = vsel %vm408, %v392, %v424
  %v441 = vsel %vm409, %v393, %v425
  %v442 = vsel %vm410, %v394, %v426
  %v443 = vsel %vm411, %v395, %v427
  %v444 = vsel %vm412, %v396, %v428
  %v445 = vsel %vm413, %v397, %v429
  %v446 = vsel %vm414, %v398, %v430
  %v447 = vsel %vm415, %v399, %v431
  %448 = vst.msk [vmem:[#allocation2] sm:$0xff] %vm254, 0.0
  %449 = vst.msk [vmem:[#allocation2 + $0x8] sm:$0xff] %vm254, 0.0
  %450 = vst.msk [vmem:[#allocation2 + $0x10] sm:$0xff] %vm254, 0.0
  %451 = vst.msk [vmem:[#allocation2 + $0x18] sm:$0xff] %vm254, 0.0
  %452 = vst.msk [vmem:[#allocation2 + $0x20] sm:$0xff] %vm254, 0.0
  %453 = vst.msk [vmem:[#allocation2 + $0x28] sm:$0xff] %vm254, 0.0
  %454 = vst.msk [vmem:[#allocation2 + $0x30] sm:$0xff] %vm254, 0.0
  %455 = vst.msk [vmem:[#allocation2 + $0x38] sm:$0xff] %vm254, 0.0
  %456 = vst.msk [vmem:[#allocation2 + $0x40] sm:$0xff] %vm254, 0.0
  %457 = vst.msk [vmem:[#allocation2 + $0x48] sm:$0xff] %vm254, 0.0
  %458 = vst.msk [vmem:[#allocation2 + $0x50] sm:$0xff] %vm254, 0.0
  %459 = vst.msk [vmem:[#allocation2 + $0x58] sm:$0xff] %vm254, 0.0
  %460 = vst.msk [vmem:[#allocation2 + $0x60] sm:$0xff] %vm254, 0.0
  %461 = vst.msk [vmem:[#allocation2 + $0x68] sm:$0xff] %vm254, 0.0
  %462 = vst.msk [vmem:[#allocation2 + $0x70] sm:$0xff] %vm254, 0.0
  %463 = vst.msk [vmem:[#allocation2 + $0x78] sm:$0xff] %vm254, 0.0
  %464 = vst.msk [vmem:[#allocation2 + $0x80] sm:$0xff] %vm254, 0.0
  %465 = vst.msk [vmem:[#allocation2 + $0x88] sm:$0xff] %vm254, 0.0
  %466 = vst.msk [vmem:[#allocation2 + $0x90] sm:$0xff] %vm254, 0.0
  %467 = vst.msk [vmem:[#allocation2 + $0x98] sm:$0xff] %vm254, 0.0
  %468 = vst.msk [vmem:[#allocation2 + $0xa0] sm:$0xff] %vm254, 0.0
  %469 = vst.msk [vmem:[#allocation2 + $0xa8] sm:$0xff] %vm254, 0.0
  %470 = vst.msk [vmem:[#allocation2 + $0xb0] sm:$0xff] %vm254, 0.0
  %471 = vst.msk [vmem:[#allocation2 + $0xb8] sm:$0xff] %vm254, 0.0
  %472 = vst.msk [vmem:[#allocation2 + $0x10] sm:$0xff] %vm254, %v432
  %473 = vst.msk [vmem:[#allocation2 + $0x18] sm:$0xff] %vm254, %v433
  %474 = vst.msk [vmem:[#allocation2 + $0x20] sm:$0xff] %vm254, %v434
  %475 = vst.msk [vmem:[#allocation2 + $0x28] sm:$0xff] %vm254, %v435
  %476 = vst.msk [vmem:[#allocation2 + $0x40] sm:$0xff] %vm254, %v436
  %477 = vst.msk [vmem:[#allocation2 + $0x48] sm:$0xff] %vm254, %v437
  %478 = vst.msk [vmem:[#allocation2 + $0x50] sm:$0xff] %vm254, %v438
  %479 = vst.msk [vmem:[#allocation2 + $0x58] sm:$0xff] %vm254, %v439
  %480 = vst.msk [vmem:[#allocation2 + $0x70] sm:$0xff] %vm254, %v440
  %481 = vst.msk [vmem:[#allocation2 + $0x78] sm:$0xff] %vm254, %v441
  %482 = vst.msk [vmem:[#allocation2 + $0x80] sm:$0xff] %vm254, %v442
  %483 = vst.msk [vmem:[#allocation2 + $0x88] sm:$0xff] %vm254, %v443
  %484 = vst.msk [vmem:[#allocation2 + $0xa0] sm:$0xff] %vm254, %v444
  %485 = vst.msk [vmem:[#allocation2 + $0xa8] sm:$0xff] %vm254, %v445
  %486 = vst.msk [vmem:[#allocation2 + $0xb0] sm:$0xff] %vm254, %v446
  %487 = vst.msk [vmem:[#allocation2 + $0xb8] sm:$0xff] %vm254, %v447
  %v488 = vld [vmem:[%s7] sm:$0xff]
  %v489 = vld [vmem:[%s7 + $0x8] sm:$0xff]
  %v490 = vld [vmem:[%s7 + $0x10] sm:$0xff]
  %v491 = vld [vmem:[%s7 + $0x18] sm:$0xff]
  %v492 = vld [vmem:[#allocation2 + $0x96] sm:$0xff]
  %v493 = vld [vmem:[#allocation2 + $0x9e] sm:$0xff]
  %v494 = vld [vmem:[#allocation2 + $0xa6] sm:$0xff]
  %v495 = vld [vmem:[#allocation2 + $0xae] sm:$0xff]
  %497 = vset.pattern.permute.xlu0 0
  %498 = vperm.xlu0 %497, %v488
  %v499 = vpop.permute.xlu0 %498
  %502 = vset.pattern.permute.xlu0 0
  %503 = vperm.xlu0 %502, %v489
  %v504 = vpop.permute.xlu0 %503
  %507 = vset.pattern.permute.xlu0 0
  %508 = vperm.xlu0 %507, %v490
  %v509 = vpop.permute.xlu0 %508
  %512 = vset.pattern.permute.xlu0 0
  %513 = vperm.xlu0 %512, %v491
  %v514 = vpop.permute.xlu0 %513
  %v516 = vmul.f32 %v492, %v499
  %v517 = vmul.f32 %v493, %v504
  %v518 = vmul.f32 %v494, %v509
  %v519 = vmul.f32 %v495, %v514
  %520 = vst.msk [vmem:[#allocation3] sm:$0xff] %vm254, %v516
  %521 = vst.msk [vmem:[#allocation3 + $0x8] sm:$0xff] %vm254, %v517
  %522 = vst.msk [vmem:[#allocation3 + $0x10] sm:$0xff] %vm254, %v518
  %523 = vst.msk [vmem:[#allocation3 + $0x18] sm:$0xff] %vm254, %v519
  %v524 = vld [vmem:[#allocation2 + $0x68] sm:$0xff]
  %v525 = vld [vmem:[#allocation2 + $0x70] sm:$0xff]
  %v526 = vld [vmem:[#allocation2 + $0x78] sm:$0xff]
  %v527 = vld [vmem:[#allocation2 + $0x80] sm:$0xff]
  %528 = vset.pattern.permute.xlu0 1
  %529 = vperm.xlu0 %528, %v488
  %v530 = vpop.permute.xlu0 %529
  %532 = vset.pattern.permute.xlu0 1
  %533 = vperm.xlu0 %532, %v489
  %v534 = vpop.permute.xlu0 %533
  %536 = vset.pattern.permute.xlu0 1
  %537 = vperm.xlu0 %536, %v490
  %v538 = vpop.permute.xlu0 %537
  %540 = vset.pattern.permute.xlu0 1
  %541 = vperm.xlu0 %540, %v491
  %v542 = vpop.permute.xlu0 %541
  %v544 = vmul.f32 %v524, %v530
  %v545 = vmul.f32 %v525, %v534
  %v546 = vmul.f32 %v526, %v538
  %v547 = vmul.f32 %v527, %v542
  %552 = vrot.lane.b32.xlu0 %v544, 8
  %v553 = vpop.permute.xlu0 %552
  %554 = vrot.lane.b32.xlu0 %v545, 8
  %v555 = vpop.permute.xlu0 %554
  %556 = vrot.lane.b32.xlu0 %v546, 8
  %v557 = vpop.permute.xlu0 %556
  %558 = vrot.lane.b32.xlu0 %v547, 8
  %v559 = vpop.permute.xlu0 %558
  %vm564 = vcmask 130112
  %565 = vst.msk [vmem:[#allocation3] sm:$0xff] %vm564, %v553
  %566 = vst.msk [vmem:[#allocation3 + $0x8] sm:$0xff] %vm564, %v555
  %567 = vst.msk [vmem:[#allocation3 + $0x10] sm:$0xff] %vm564, %v557
  %568 = vst.msk [vmem:[#allocation3 + $0x18] sm:$0xff] %vm564, %v559
  %v569 = vld [vmem:[#allocation2 + $0x98] sm:$0xff]
  %v570 = vld [vmem:[#allocation2 + $0xa0] sm:$0xff]
  %v571 = vld [vmem:[#allocation2 + $0xa8] sm:$0xff]
  %v572 = vld [vmem:[#allocation2 + $0xb0] sm:$0xff]
  %573 = vset.pattern.permute.xlu0 2
  %574 = vperm.xlu0 %573, %v488
  %v575 = vpop.permute.xlu0 %574
  %577 = vset.pattern.permute.xlu0 2
  %578 = vperm.xlu0 %577, %v489
  %v579 = vpop.permute.xlu0 %578
  %581 = vset.pattern.permute.xlu0 2
  %582 = vperm.xlu0 %581, %v490
  %v583 = vpop.permute.xlu0 %582
  %585 = vset.pattern.permute.xlu0 2
  %586 = vperm.xlu0 %585, %v491
  %v587 = vpop.permute.xlu0 %586
  %v589 = vmul.f32 %v569, %v575
  %v590 = vmul.f32 %v570, %v579
  %v591 = vmul.f32 %v571, %v583
  %v592 = vmul.f32 %v572, %v587
  %597 = vrot.lane.b32.xlu0 %v589, 16
  %v598 = vpop.permute.xlu0 %597
  %599 = vrot.lane.b32.xlu0 %v590, 16
  %v600 = vpop.permute.xlu0 %599
  %601 = vrot.lane.b32.xlu0 %v591, 16
  %v602 = vpop.permute.xlu0 %601
  %603 = vrot.lane.b32.xlu0 %v592, 16
  %v604 = vpop.permute.xlu0 %603
  %vm609 = vcmask 195712
  %610 = vst.msk [vmem:[#allocation3] sm:$0xff] %vm609, %v598
  %611 = vst.msk [vmem:[#allocation3 + $0x8] sm:$0xff] %vm609, %v600
  %612 = vst.msk [vmem:[#allocation3 + $0x10] sm:$0xff] %vm609, %v602
  %613 = vst.msk [vmem:[#allocation3 + $0x18] sm:$0xff] %vm609, %v604
  %v614 = vld [vmem:[#allocation2 + $0x3e] sm:$0xff]
  %v615 = vld [vmem:[#allocation2 + $0x46] sm:$0xff]
  %v616 = vld [vmem:[#allocation2 + $0x4e] sm:$0xff]
  %v617 = vld [vmem:[#allocation2 + $0x56] sm:$0xff]
  %618 = vset.pattern.permute.xlu0 3
  %619 = vperm.xlu0 %618, %v488
  %v620 = vpop.permute.xlu0 %619
  %622 = vset.pattern.permute.xlu0 3
  %623 = vperm.xlu0 %622, %v489
  %v624 = vpop.permute.xlu0 %623
  %626 = vset.pattern.permute.xlu0 3
  %627 = vperm.xlu0 %626, %v490
  %v628 = vpop.permute.xlu0 %627
  %630 = vset.pattern.permute.xlu0 3
  %631 = vperm.xlu0 %630, %v491
  %v632 = vpop.permute.xlu0 %631
  %v634 = vmul.f32 %v614, %v620
  %v635 = vmul.f32 %v615, %v624
  %v636 = vmul.f32 %v616, %v628
  %v637 = vmul.f32 %v617, %v632
  %642 = vrot.lane.b32.xlu0 %v634, 24
  %v643 = vpop.permute.xlu0 %642
  %644 = vrot.lane.b32.xlu0 %v635, 24
  %v645 = vpop.permute.xlu0 %644
  %646 = vrot.lane.b32.xlu0 %v636, 24
  %v647 = vpop.permute.xlu0 %646
  %648 = vrot.lane.b32.xlu0 %v637, 24
  %v649 = vpop.permute.xlu0 %648
  %vm654 = vcmask 261312
  %655 = vst.msk [vmem:[#allocation3] sm:$0xff] %vm654, %v643
  %656 = vst.msk [vmem:[#allocation3 + $0x8] sm:$0xff] %vm654, %v645
  %657 = vst.msk [vmem:[#allocation3 + $0x10] sm:$0xff] %vm654, %v647
  %658 = vst.msk [vmem:[#allocation3 + $0x18] sm:$0xff] %vm654, %v649
  %v659 = vld [vmem:[#allocation2 + $0x10] sm:$0xff]
  %v660 = vld [vmem:[#allocation2 + $0x18] sm:$0xff]
  %v661 = vld [vmem:[#allocation2 + $0x20] sm:$0xff]
  %v662 = vld [vmem:[#allocation2 + $0x28] sm:$0xff]
  %663 = vset.pattern.permute.xlu0 4
  %664 = vperm.xlu0 %663, %v488
  %v665 = vpop.permute.xlu0 %664
  %667 = vset.pattern.permute.xlu0 4
  %668 = vperm.xlu0 %667, %v489
  %v669 = vpop.permute.xlu0 %668
  %671 = vset.pattern.permute.xlu0 4
  %672 = vperm.xlu0 %671, %v490
  %v673 = vpop.permute.xlu0 %672
  %675 = vset.pattern.permute.xlu0 4
  %676 = vperm.xlu0 %675, %v491
  %v677 = vpop.permute.xlu0 %676
  %v679 = vmul.f32 %v659, %v665
  %v680 = vmul.f32 %v660, %v669
  %v681 = vmul.f32 %v661, %v673
  %v682 = vmul.f32 %v662, %v677
  %687 = vrot.lane.b32.xlu0 %v679, 32
  %v688 = vpop.permute.xlu0 %687
  %689 = vrot.lane.b32.xlu0 %v680, 32
  %v690 = vpop.permute.xlu0 %689
  %691 = vrot.lane.b32.xlu0 %v681, 32
  %v692 = vpop.permute.xlu0 %691
  %693 = vrot.lane.b32.xlu0 %v682, 32
  %v694 = vpop.permute.xlu0 %693
  %vm699 = vcmask 326912
  %700 = vst.msk [vmem:[#allocation3] sm:$0xff] %vm699, %v688
  %701 = vst.msk [vmem:[#allocation3 + $0x8] sm:$0xff] %vm699, %v690
  %702 = vst.msk [vmem:[#allocation3 + $0x10] sm:$0xff] %vm699, %v692
  %703 = vst.msk [vmem:[#allocation3 + $0x18] sm:$0xff] %vm699, %v694
  %v704 = vld [vmem:[#allocation2 + $0x40] sm:$0xff]
  %v705 = vld [vmem:[#allocation2 + $0x48] sm:$0xff]
  %v706 = vld [vmem:[#allocation2 + $0x50] sm:$0xff]
  %v707 = vld [vmem:[#allocation2 + $0x58] sm:$0xff]
  %708 = vset.pattern.permute.xlu0 5
  %709 = vperm.xlu0 %708, %v488
  %v710 = vpop.permute.xlu0 %709
  %712 = vset.pattern.permute.xlu0 5
  %713 = vperm.xlu0 %712, %v489
  %v714 = vpop.permute.xlu0 %713
  %716 = vset.pattern.permute.xlu0 5
  %717 = vperm.xlu0 %716, %v490
  %v718 = vpop.permute.xlu0 %717
  %720 = vset.pattern.permute.xlu0 5
  %721 = vperm.xlu0 %720, %v491
  %v722 = vpop.permute.xlu0 %721
  %v724 = vmul.f32 %v704, %v710
  %v725 = vmul.f32 %v705, %v714
  %v726 = vmul.f32 %v706, %v718
  %v727 = vmul.f32 %v707, %v722
  %732 = vrot.lane.b32.xlu0 %v724, 40
  %v733 = vpop.permute.xlu0 %732
  %734 = vrot.lane.b32.xlu0 %v725, 40
  %v735 = vpop.permute.xlu0 %734
  %736 = vrot.lane.b32.xlu0 %v726, 40
  %v737 = vpop.permute.xlu0 %736
  %738 = vrot.lane.b32.xlu0 %v727, 40
  %v739 = vpop.permute.xlu0 %738
  %vm744 = vcmask 392512
  %745 = vst.msk [vmem:[#allocation3] sm:$0xff] %vm744, %v733
  %746 = vst.msk [vmem:[#allocation3 + $0x8] sm:$0xff] %vm744, %v735
  %747 = vst.msk [vmem:[#allocation3 + $0x10] sm:$0xff] %vm744, %v737
  %748 = vst.msk [vmem:[#allocation3 + $0x18] sm:$0xff] %vm744, %v739
  %v749 = vld [vmem:[#allocation2 + $0x9e] sm:$0xff]
  %v750 = vld [vmem:[#allocation2 + $0xa6] sm:$0xff]
  %v751 = vld [vmem:[#allocation2 + $0xae] sm:$0xff]
  %v752 = vld [vmem:[#allocation2 + $0xb6] sm:$0xff]
  %753 = vset.pattern.permute.xlu0 6
  %754 = vperm.xlu0 %753, %v488
  %v755 = vpop.permute.xlu0 %754
  %757 = vset.pattern.permute.xlu0 6
  %758 = vperm.xlu0 %757, %v489
  %v759 = vpop.permute.xlu0 %758
  %761 = vset.pattern.permute.xlu0 6
  %762 = vperm.xlu0 %761, %v490
  %v763 = vpop.permute.xlu0 %762
  %765 = vset.pattern.permute.xlu0 6
  %766 = vperm.xlu0 %765, %v491
  %v767 = vpop.permute.xlu0 %766
  %v769 = vmul.f32 %v749, %v755
  %v770 = vmul.f32 %v750, %v759
  %v771 = vmul.f32 %v751, %v763
  %v772 = vmul.f32 %v752, %v767
  %777 = vrot.lane.b32.xlu0 %v769, 48
  %v778 = vpop.permute.xlu0 %777
  %779 = vrot.lane.b32.xlu0 %v770, 48
  %v780 = vpop.permute.xlu0 %779
  %781 = vrot.lane.b32.xlu0 %v771, 48
  %v782 = vpop.permute.xlu0 %781
  %783 = vrot.lane.b32.xlu0 %v772, 48
  %v784 = vpop.permute.xlu0 %783
  %vm789 = vcmask 458112
  %790 = vst.msk [vmem:[#allocation3] sm:$0xff] %vm789, %v778
  %791 = vst.msk [vmem:[#allocation3 + $0x8] sm:$0xff] %vm789, %v780
  %792 = vst.msk [vmem:[#allocation3 + $0x10] sm:$0xff] %vm789, %v782
  %793 = vst.msk [vmem:[#allocation3 + $0x18] sm:$0xff] %vm789, %v784
  %v794 = vld [vmem:[#allocation2 + $0x70] sm:$0xff]
  %v795 = vld [vmem:[#allocation2 + $0x78] sm:$0xff]
  %v796 = vld [vmem:[#allocation2 + $0x80] sm:$0xff]
  %v797 = vld [vmem:[#allocation2 + $0x88] sm:$0xff]
  %798 = vset.pattern.permute.xlu0 7
  %799 = vperm.xlu0 %798, %v488
  %v800 = vpop.permute.xlu0 %799
  %802 = vset.pattern.permute.xlu0 7
  %803 = vperm.xlu0 %802, %v489
  %v804 = vpop.permute.xlu0 %803
  %806 = vset.pattern.permute.xlu0 7
  %807 = vperm.xlu0 %806, %v490
  %v808 = vpop.permute.xlu0 %807
  %810 = vset.pattern.permute.xlu0 7
  %811 = vperm.xlu0 %810, %v491
  %v812 = vpop.permute.xlu0 %811
  %v814 = vmul.f32 %v794, %v800
  %v815 = vmul.f32 %v795, %v804
  %v816 = vmul.f32 %v796, %v808
  %v817 = vmul.f32 %v797, %v812
  %822 = vrot.lane.b32.xlu0 %v814, 56
  %v823 = vpop.permute.xlu0 %822
  %824 = vrot.lane.b32.xlu0 %v815, 56
  %v825 = vpop.permute.xlu0 %824
  %826 = vrot.lane.b32.xlu0 %v816, 56
  %v827 = vpop.permute.xlu0 %826
  %828 = vrot.lane.b32.xlu0 %v817, 56
  %v829 = vpop.permute.xlu0 %828
  %vm834 = vcmask 523712
  %835 = vst.msk [vmem:[#allocation3] sm:$0xff] %vm834, %v823
  %836 = vst.msk [vmem:[#allocation3 + $0x8] sm:$0xff] %vm834, %v825
  %837 = vst.msk [vmem:[#allocation3 + $0x10] sm:$0xff] %vm834, %v827
  %838 = vst.msk [vmem:[#allocation3 + $0x18] sm:$0xff] %vm834, %v829
  %v839 = vld [vmem:[#allocation2 + $0xa0] sm:$0xff]
  %v840 = vld [vmem:[#allocation2 + $0xa8] sm:$0xff]
  %v841 = vld [vmem:[#allocation2 + $0xb0] sm:$0xff]
  %v842 = vld [vmem:[#allocation2 + $0xb8] sm:$0xff]
  %843 = vset.pattern.permute.xlu0 8
  %844 = vperm.xlu0 %843, %v488
  %v845 = vpop.permute.xlu0 %844
  %847 = vset.pattern.permute.xlu0 8
  %848 = vperm.xlu0 %847, %v489
  %v849 = vpop.permute.xlu0 %848
  %851 = vset.pattern.permute.xlu0 8
  %852 = vperm.xlu0 %851, %v490
  %v853 = vpop.permute.xlu0 %852
  %855 = vset.pattern.permute.xlu0 8
  %856 = vperm.xlu0 %855, %v491
  %v857 = vpop.permute.xlu0 %856
  %v859 = vmul.f32 %v839, %v845
  %v860 = vmul.f32 %v840, %v849
  %v861 = vmul.f32 %v841, %v853
  %v862 = vmul.f32 %v842, %v857
  %867 = vrot.lane.b32.xlu0 %v859, 64
  %v868 = vpop.permute.xlu0 %867
  %869 = vrot.lane.b32.xlu0 %v860, 64
  %v870 = vpop.permute.xlu0 %869
  %871 = vrot.lane.b32.xlu0 %v861, 64
  %v872 = vpop.permute.xlu0 %871
  %873 = vrot.lane.b32.xlu0 %v862, 64
  %v874 = vpop.permute.xlu0 %873
  %vm879 = vcmask 589312
  %880 = vst.msk [vmem:[#allocation3] sm:$0xff] %vm879, %v868
  %881 = vst.msk [vmem:[#allocation3 + $0x8] sm:$0xff] %vm879, %v870
  %882 = vst.msk [vmem:[#allocation3 + $0x10] sm:$0xff] %vm879, %v872
  %883 = vst.msk [vmem:[#allocation3 + $0x18] sm:$0xff] %vm879, %v874
  %v884 = vld [vmem:[#allocation3] sm:$0xff]
  %v885 = vld [vmem:[#allocation3 + $0x8] sm:$0xff]
  %v886 = vld [vmem:[#allocation3 + $0x10] sm:$0xff]
  %v887 = vld [vmem:[#allocation3 + $0x18] sm:$0xff]
  %v888 = vld [vmem:[%s4] sm:$0xff]
  %v889 = vld [vmem:[%s4 + $0x8] sm:$0xff]
  %v890 = vld [vmem:[%s4 + $0x10] sm:$0xff]
  %v891 = vld [vmem:[%s4 + $0x18] sm:$0xff]
  %v892 = vld [vmem:[%s4 + $0x20] sm:$0xff]
  %v893 = vld [vmem:[%s4 + $0x28] sm:$0xff]
  %v894 = vld [vmem:[%s4 + $0x30] sm:$0xff]
  %v895 = vld [vmem:[%s4 + $0x38] sm:$0xff]
  %v896 = vld [vmem:[%s4 + $0x40] sm:$0xff]
  %vm897 = vcmask 588800
  %v899 = vsel %vm897, %v884, 0
  %v902 = vsel %vm897, %v885, 0
  %v905 = vsel %vm897, %v886, 0
  %v908 = vsel %vm897, %v887, 0
  %910 = vmatprep.subr.mxu0 0.0
  %911 = vmatpush1.msra.mxu0 %v888
  %912 = vmatprep.subr.mxu0 0.0
  %913 = vmatpush1.msra.mxu0 %v889
  %914 = vmatprep.subr.mxu0 0.0
  %915 = vmatpush1.msra.mxu0 %v890
  %916 = vmatprep.subr.mxu0 0.0
  %917 = vmatpush1.msra.mxu0 %v891
  %918 = vmatprep.subr.mxu0 0.0
  %919 = vmatpush1.msra.mxu0 %v892
  %920 = vmatprep.subr.mxu0 0.0
  %921 = vmatpush1.msra.mxu0 %v893
  %922 = vmatprep.subr.mxu0 0.0
  %923 = vmatpush1.msra.mxu0 %v894
  %924 = vmatprep.subr.mxu0 0.0
  %925 = vmatpush1.msra.mxu0 %v895
  %926 = vmatprep.subr.mxu0 0.0
  %927 = vmatpush1.msra.mxu0 %v896
  %928 = vmatprep.subr.mxu0 0.0
  %929 = vmatpush1.msra.mxu0 0.0
  %930 = vmatprep.subr.mxu0 0.0
  %931 = vmatpush1.msra.mxu0 0.0
  %932 = vmatprep.subr.mxu0 0.0
  %933 = vmatpush1.msra.mxu0 0.0
  %934 = vmatprep.subr.mxu0 0.0
  %935 = vmatpush1.msra.mxu0 0.0
  %936 = vmatprep.subr.mxu0 0.0
  %937 = vmatpush1.msra.mxu0 0.0
  %938 = vmatprep.subr.mxu0 0.0
  %939 = vmatpush1.msra.mxu0 0.0
  %940 = vmatprep.subr.mxu0 0.0
  %941 = vmatpush1.msra.mxu0 0.0
  %942 = vmatprep.subr.mxu0 0.0
  %943 = vmatpush1.msra.mxu0 0.0
  %944 = vmatprep.subr.mxu0 0.0
  %945 = vmatpush1.msra.mxu0 0.0
  %946 = vmatprep.subr.mxu0 0.0
  %947 = vmatpush1.msra.mxu0 0.0
  %948 = vmatprep.subr.mxu0 0.0
  %949 = vmatpush1.msra.mxu0 0.0
  %950 = vmatprep.subr.mxu0 0.0
  %951 = vmatpush1.msra.mxu0 0.0
  %952 = vmatprep.subr.mxu0 0.0
  %953 = vmatpush1.msra.mxu0 0.0
  %954 = vmatprep.subr.mxu0 0.0
  %955 = vmatpush1.msra.mxu0 0.0
  %956 = vmatprep.subr.mxu0 0.0
  %957 = vmatpush1.msra.mxu0 0.0
  %958 = vmatprep.subr.mxu0 0.0
  %959 = vmatpush1.msra.mxu0 0.0
  %960 = vmatprep.subr.mxu0 0.0
  %961 = vmatpush1.msra.mxu0 0.0
  %962 = vmatprep.subr.mxu0 0.0
  %963 = vmatpush1.msra.mxu0 0.0
  %964 = vmatprep.subr.mxu0 0.0
  %965 = vmatpush1.msra.mxu0 0.0
  %966 = vmatprep.subr.mxu0 0.0
  %967 = vmatpush1.msra.mxu0 0.0
  %968 = vmatprep.subr.mxu0 0.0
  %969 = vmatpush1.msra.mxu0 0.0
  %970 = vmatprep.subr.mxu0 0.0
  %971 = vmatpush1.msra.mxu0 0.0
  %972 = vmatprep.subr.mxu0 0.0
  %973 = vmatpush1.msra.mxu0 0.0
  %974 = vmatprep.mubr.f32.mxu0 0.0
  %975 = vmatmul.mubr.f32.gmra.mrb[0].mxu0 %v899
  %v976 = vpop.f32.mrb[0].mxu0
  %v977 = vadd.f32 0.0, %v976
  %v978 = vpop.f32.mrb[0].mxu0
  %979 = vmatprep.mubr.f32.mxu0 0.0
  %980 = vmatmul.mubr.f32.gmra.mrb[0].mxu0 %v902
  %v981 = vpop.f32.mrb[0].mxu0
  %v982 = vadd.f32 0.0, %v981
  %v983 = vpop.f32.mrb[0].mxu0
  %984 = vmatprep.mubr.f32.mxu0 0.0
  %985 = vmatmul.mubr.f32.gmra.mrb[0].mxu0 %v905
  %v986 = vpop.f32.mrb[0].mxu0
  %v987 = vadd.f32 0.0, %v986
  %v988 = vpop.f32.mrb[0].mxu0
  %989 = vmatprep.mubr.f32.mxu0 0.0
  %990 = vmatmul.mubr.f32.gmra.mrb[0].mxu0 %v908
  %v991 = vpop.f32.mrb[0].mxu0
  %v992 = vadd.f32 0.0, %v991
  %v993 = vpop.f32.mrb[0].mxu0
  %994 = vdwg.mxu0
  %vm995 = vcmask 130048
  %v996 = vsel %vm995, %v977, 0.0
  %v997 = vsel %vm995, %v982, 0.0
  %v998 = vadd.f32 %v996, %v997
  %v999 = vsel %vm995, %v987, 0.0
  %v1000 = vadd.f32 %v998, %v999
  %v1001 = vsel %vm995, %v992, 0.0
  %v1002 = vadd.f32 %v1000, %v1001
  %v1003 = vrot.slane %v1002, 4
  %v1004 = vadd.f32 %v1002, %v1003
  %v1005 = vrot.slane %v1004, 2
  %v1006 = vadd.f32 %v1004, %v1005
  %v1007 = vrot.slane %v1006, 1
  %v1008 = vadd.f32 %v1006, %v1007
  %v1009 = vmul.f32 %v1008, 0.03125
  %v1010 = vmul.f32 %v977, %v977
  %v1011 = vmul.f32 %v982, %v982
  %v1012 = vmul.f32 %v987, %v987
  %v1013 = vmul.f32 %v992, %v992
  %v1014 = vsel %vm995, %v1010, 0.0
  %v1015 = vsel %vm995, %v1011, 0.0
  %v1016 = vadd.f32 %v1014, %v1015
  %v1017 = vsel %vm995, %v1012, 0.0
  %v1018 = vadd.f32 %v1016, %v1017
  %v1019 = vsel %vm995, %v1013, 0.0
  %v1020 = vadd.f32 %v1018, %v1019
  %v1021 = vrot.slane %v1020, 4
  %v1022 = vadd.f32 %v1020, %v1021
  %v1023 = vrot.slane %v1022, 2
  %v1024 = vadd.f32 %v1022, %v1023
  %v1025 = vrot.slane %v1024, 1
  %v1026 = vadd.f32 %v1024, %v1025
  %v1027 = vmul.f32 %v1026, 0.03125
  %v1028 = vmul.f32 %v1009, %v1009
  %v1029 = vsub.f32 %v1027, %v1028
  %v1030 = vld [vmem:[%s5] sm:$0x1]
  %v1031 = vadd.f32 %v1029, 1e-05
  %v1032 = vrsqrt.pop %v1031
  %v1033 = vmul.f32 %v1030, %v1032
  %v1034 = vld [vmem:[%s6] sm:$0x1]
  %v1035 = vmul.f32 %v1009, %v1033
  %v1036 = vsub.f32 %v1034, %v1035
  %v1038 = vlaneseq
  %v1039 = vshrl.u32 %v1038, 7
  %v1040 = vsub.s32 0, %v1039
  %v1041 = vrot.slane %v1033, %v1040
  %v1043 = vmul.f32 %v977, %v1041
  %v1044 = vmul.f32 %v982, %v1041
  %v1045 = vmul.f32 %v987, %v1041
  %v1046 = vmul.f32 %v992, %v1041
  %v1048 = vlaneseq
  %v1049 = vshrl.u32 %v1048, 7
  %v1050 = vsub.s32 0, %v1049
  %v1051 = vrot.slane %v1036, %v1050
  %v1053 = vadd.f32 %v1043, %v1051
  %v1054 = vadd.f32 %v1044, %v1051
  %v1055 = vadd.f32 %v1045, %v1051
  %v1056 = vadd.f32 %v1046, %v1051
  %vm1057 = vcmp.ge.f32.partialorder %v1053, 0.0
  %vm1058 = vcmp.ge.f32.partialorder %v1054, 0.0
  %vm1059 = vcmp.ge.f32.partialorder %v1055, 0.0
  %vm1060 = vcmp.ge.f32.partialorder %v1056, 0.0
  %v1061 = vmul.f32 %v1053, 0.01
  %v1062 = vmul.f32 %v1054, 0.01
  %v1063 = vmul.f32 %v1055, 0.01
  %v1064 = vmul.f32 %v1056, 0.01
  %v1065 = vsel %vm1057, %v1053, %v1061
  %v1066 = vsel %vm1058, %v1054, %v1062
  %v1067 = vsel %vm1059, %v1055, %v1063
  %v1068 = vsel %vm1060, %v1056, %v1064
  %vm1069 = vcmask 123904
  %1070 = vst.msk [vmem:[#allocation4] sm:$0x3] %vm1069, %v1065
  %v1073 = vunpack.c.l.s4 1983009808
  %v1074 = vunpack.c.0.s8 %v1073
  %v1075 = vlaneseq
  %v1076 = vshrl.u32 %v1075, 7
  %v1077 = vsub.s32 %v1074, %v1076
  %v1078 = vrot.slane %v1065, %v1077
  %v1079 = vcombine.high %v1078, %v1078
  %1080 = vrot.lane.b32.xlu0 %v1079, 16
  %v1081 = vpop.permute.xlu0 %1080
  %vm1083 = vcmask 255104
  %1084 = vst.msk [vmem:[#allocation4] sm:$0x3] %vm1083, %v1081
  %v1085 = vcombine.high %v1065, %v1065
  %v1087 = vunpack.c.l.s4 1983009808
  %v1088 = vunpack.c.0.s8 %v1087
  %v1089 = vlaneseq
  %v1090 = vshrl.u32 %v1089, 7
  %v1091 = vsub.s32 %v1088, %v1090
  %v1092 = vrot.slane %v1085, %v1091
  %1093 = vrot.lane.b32.xlu0 %v1092, 32
  %v1094 = vpop.permute.xlu0 %1093
  %vm1096 = vcmask 386304
  %1097 = vst.msk [vmem:[#allocation4] sm:$0x3] %vm1096, %v1094
  %v1098 = vcombine.high %v1092, %v1092
  %1099 = vrot.lane.b32.xlu0 %v1098, 48
  %v1100 = vpop.permute.xlu0 %1099
  %vm1102 = vcmask 517504
  %1103 = vst.msk [vmem:[#allocation4] sm:$0x3] %vm1102, %v1100
  %v1106 = vunpack.c.l.s4 1983009808
  %v1107 = vunpack.c.0.s8 %v1106
  %v1108 = vlaneseq
  %v1109 = vshrl.u32 %v1108, 7
  %v1110 = vsub.s32 %v1107, %v1109
  %v1111 = vrot.slane %v1066, %v1110
  %1112 = vrot.lane.b32.xlu0 %v1111, 64
  %v1113 = vpop.permute.xlu0 %1112
  %vm1115 = vcmask 648704
  %1116 = vst.msk [vmem:[#allocation4] sm:$0x3] %vm1115, %v1113
  %v1117 = vcombine.high %v1111, %v1111
  %1118 = vrot.lane.b32.xlu0 %v1117, 80
  %v1119 = vpop.permute.xlu0 %1118
  %vm1121 = vcmask 779904
  %1122 = vst.msk [vmem:[#allocation4] sm:$0x3] %vm1121, %v1119
  %v1123 = vcombine.high %v1066, %v1066
  %v1125 = vunpack.c.l.s4 1983009808
  %v1126 = vunpack.c.0.s8 %v1125
  %v1127 = vlaneseq
  %v1128 = vshrl.u32 %v1127, 7
  %v1129 = vsub.s32 %v1126, %v1128
  %v1130 = vrot.slane %v1123, %v1129
  %1131 = vrot.lane.b32.xlu0 %v1130, 96
  %v1132 = vpop.permute.xlu0 %1131
  %vm1134 = vcmask 911104
  %1135 = vst.msk [vmem:[#allocation4] sm:$0x3] %vm1134, %v1132
  %v1136 = vcombine.high %v1130, %v1130
  %1137 = vrot.lane.b32.xlu0 %v1136, 112
  %v1138 = vpop.permute.xlu0 %1137
  %vm1140 = vcmask 1042304
  %1141 = vst.msk [vmem:[#allocation4] sm:$0x3] %vm1140, %v1138
  %1142 = vst.msk [vmem:[#allocation4 + $0x2] sm:$0x3] %vm1069, %v1067
  %v1145 = vunpack.c.l.s4 1983009808
  %v1146 = vunpack.c.0.s8 %v1145
  %v1147 = vlaneseq
  %v1148 = vshrl.u32 %v1147, 7
  %v1149 = vsub.s32 %v1146, %v1148
  %v1150 = vrot.slane %v1067, %v1149
  %v1151 = vcombine.high %v1150, %v1150
  %1152 = vrot.lane.b32.xlu0 %v1151, 16
  %v1153 = vpop.permute.xlu0 %1152
  %1155 = vst.msk [vmem:[#allocation4 + $0x2] sm:$0x3] %vm1083, %v1153
  %v1156 = vcombine.high %v1067, %v1067
  %v1158 = vunpack.c.l.s4 1983009808
  %v1159 = vunpack.c.0.s8 %v1158
  %v1160 = vlaneseq
  %v1161 = vshrl.u32 %v1160, 7
  %v1162 = vsub.s32 %v1159, %v1161
  %v1163 = vrot.slane %v1156, %v1162
  %1164 = vrot.lane.b32.xlu0 %v1163, 32
  %v1165 = vpop.permute.xlu0 %1164
  %1167 = vst.msk [vmem:[#allocation4 + $0x2] sm:$0x3] %vm1096, %v1165
  %v1168 = vcombine.high %v1163, %v1163
  %1169 = vrot.lane.b32.xlu0 %v1168, 48
  %v1170 = vpop.permute.xlu0 %1169
  %1172 = vst.msk [vmem:[#allocation4 + $0x2] sm:$0x3] %vm1102, %v1170
  %v1175 = vunpack.c.l.s4 1983009808
  %v1176 = vunpack.c.0.s8 %v1175
  %v1177 = vlaneseq
  %v1178 = vshrl.u32 %v1177, 7
  %v1179 = vsub.s32 %v1176, %v1178
  %v1180 = vrot.slane %v1068, %v1179
  %1181 = vrot.lane.b32.xlu0 %v1180, 64
  %v1182 = vpop.permute.xlu0 %1181
  %1184 = vst.msk [vmem:[#allocation4 + $0x2] sm:$0x3] %vm1115, %v1182
  %v1185 = vcombine.high %v1180, %v1180
  %1186 = vrot.lane.b32.xlu0 %v1185, 80
  %v1187 = vpop.permute.xlu0 %1186
  %1189 = vst.msk [vmem:[#allocation4 + $0x2] sm:$0x3] %vm1121, %v1187
  %v1190 = vcombine.high %v1068, %v1068
  %v1192 = vunpack.c.l.s4 1983009808
  %v1193 = vunpack.c.0.s8 %v1192
  %v1194 = vlaneseq
  %v1195 = vshrl.u32 %v1194, 7
  %v1196 = vsub.s32 %v1193, %v1195
  %v1197 = vrot.slane %v1190, %v1196
  %1198 = vrot.lane.b32.xlu0 %v1197, 96
  %v1199 = vpop.permute.xlu0 %1198
  %1201 = vst.msk [vmem:[#allocation4 + $0x2] sm:$0x3] %vm1134, %v1199
  %v1202 = vcombine.high %v1197, %v1197
  %1203 = vrot.lane.b32.xlu0 %v1202, 112
  %v1204 = vpop.permute.xlu0 %1203
  %1206 = vst.msk [vmem:[#allocation4 + $0x2] sm:$0x3] %vm1140, %v1204
  %v1207 = vld [vmem:[#allocation4] sm:$0xf]
  %v1208 = vld [vmem:[%s8] sm:$0xff]
  %v1209 = vld [vmem:[%s8 + $0x8] sm:$0xff]
  %v1210 = vld [vmem:[%s8 + $0x10] sm:$0xff]
  %v1211 = vld [vmem:[%s8 + $0x18] sm:$0xff]
  %v1212 = vld [vmem:[%s8 + $0x20] sm:$0xff]
  %v1213 = vld [vmem:[%s8 + $0x28] sm:$0xff]
  %v1214 = vld [vmem:[%s8 + $0x30] sm:$0xff]
  %v1215 = vld [vmem:[%s8 + $0x38] sm:$0xff]
  %v1216 = vld [vmem:[%s8 + $0x40] sm:$0xff]
  %v1217 = vld [vmem:[%s8 + $0x48] sm:$0xff]
  %v1218 = vld [vmem:[%s8 + $0x50] sm:$0xff]
  %v1219 = vld [vmem:[%s8 + $0x58] sm:$0xff]
  %v1220 = vld [vmem:[%s8 + $0x60] sm:$0xff]
  %v1221 = vld [vmem:[%s8 + $0x68] sm:$0xff]
  %v1222 = vld [vmem:[%s8 + $0x70] sm:$0xff]
  %v1223 = vld [vmem:[%s8 + $0x78] sm:$0xff]
  %v1224 = vld [vmem:[%s8 + $0x80] sm:$0xff]
  %v1225 = vld [vmem:[%s8 + $0x88] sm:$0xff]
  %v1226 = vld [vmem:[%s8 + $0x90] sm:$0xff]
  %v1227 = vld [vmem:[%s8 + $0x98] sm:$0xff]
  %v1228 = vld [vmem:[%s8 + $0xa0] sm:$0xff]
  %v1229 = vld [vmem:[%s8 + $0xa8] sm:$0xff]
  %v1230 = vld [vmem:[%s8 + $0xb0] sm:$0xff]
  %v1231 = vld [vmem:[%s8 + $0xb8] sm:$0xff]
  %v1232 = vld [vmem:[%s8 + $0xc0] sm:$0xff]
  %v1233 = vld [vmem:[%s8 + $0xc8] sm:$0xff]
  %v1234 = vld [vmem:[%s8 + $0xd0] sm:$0xff]
  %v1235 = vld [vmem:[%s8 + $0xd8] sm:$0xff]
  %v1236 = vld [vmem:[%s8 + $0xe0] sm:$0xff]
  %v1237 = vld [vmem:[%s8 + $0xe8] sm:$0xff]
  %v1238 = vld [vmem:[%s8 + $0xf0] sm:$0xff]
  %v1239 = vld [vmem:[%s8 + $0xf8] sm:$0xff]
  %v1240 = vld [vmem:[%s9] sm:$0x1]
  %v1242 = vlaneseq
  %v1243 = vshrl.u32 %v1242, 7
  %v1244 = vsub.s32 0, %v1243
  %v1245 = vrot.slane %v1240, %v1244
  %v1249 = vunpack.c.l.s4 1983009808
  %v1250 = vunpack.c.0.s8 %v1249
  %v1251 = vlaneseq
  %v1252 = vshrl.u32 %v1251, 7
  %v1253 = vsub.s32 %v1250, %v1252
  %v1254 = vrot.slane %v1207, %v1253
  %v1255 = vcombine.high %v1254, %v1254
  %1258 = vmatprep.subr.mxu0 0.0
  %1259 = vmatpush1.msra.mxu0 %v1208
  %1260 = vmatprep.subr.mxu0 0.0
  %1261 = vmatpush1.msra.mxu0 %v1209
  %1262 = vmatprep.subr.mxu0 0.0
  %1263 = vmatpush1.msra.mxu0 %v1210
  %1264 = vmatprep.subr.mxu0 0.0
  %1265 = vmatpush1.msra.mxu0 %v1211
  %1266 = vmatprep.subr.mxu0 0.0
  %1267 = vmatpush1.msra.mxu0 %v1212
  %1268 = vmatprep.subr.mxu0 0.0
  %1269 = vmatpush1.msra.mxu0 %v1213
  %1270 = vmatprep.subr.mxu0 0.0
  %1271 = vmatpush1.msra.mxu0 %v1214
  %1272 = vmatprep.subr.mxu0 0.0
  %1273 = vmatpush1.msra.mxu0 %v1215
  %1274 = vmatprep.subr.mxu0 0.0
  %1275 = vmatpush1.msra.mxu0 %v1216
  %1276 = vmatprep.subr.mxu0 0.0
  %1277 = vmatpush1.msra.mxu0 %v1217
  %1278 = vmatprep.subr.mxu0 0.0
  %1279 = vmatpush1.msra.mxu0 %v1218
  %1280 = vmatprep.subr.mxu0 0.0
  %1281 = vmatpush1.msra.mxu0 %v1219
  %1282 = vmatprep.subr.mxu0 0.0
  %1283 = vmatpush1.msra.mxu0 %v1220
  %1284 = vmatprep.subr.mxu0 0.0
  %1285 = vmatpush1.msra.mxu0 %v1221
  %1286 = vmatprep.subr.mxu0 0.0
  %1287 = vmatpush1.msra.mxu0 %v1222
  %1288 = vmatprep.subr.mxu0 0.0
  %1289 = vmatpush1.msra.mxu0 %v1223
  %1290 = vmatprep.subr.mxu0 0.0
  %1291 = vmatpush1.msra.mxu0 %v1224
  %1292 = vmatprep.subr.mxu0 0.0
  %1293 = vmatpush1.msra.mxu0 %v1225
  %1294 = vmatprep.subr.mxu0 0.0
  %1295 = vmatpush1.msra.mxu0 %v1226
  %1296 = vmatprep.subr.mxu0 0.0
  %1297 = vmatpush1.msra.mxu0 %v1227
  %1298 = vmatprep.subr.mxu0 0.0
  %1299 = vmatpush1.msra.mxu0 %v1228
  %1300 = vmatprep.subr.mxu0 0.0
  %1301 = vmatpush1.msra.mxu0 %v1229
  %1302 = vmatprep.subr.mxu0 0.0
  %1303 = vmatpush1.msra.mxu0 %v1230
  %1304 = vmatprep.subr.mxu0 0.0
  %1305 = vmatpush1.msra.mxu0 %v1231
  %1306 = vmatprep.subr.mxu0 0.0
  %1307 = vmatpush1.msra.mxu0 %v1232
  %1308 = vmatprep.subr.mxu0 0.0
  %1309 = vmatpush1.msra.mxu0 %v1233
  %1310 = vmatprep.subr.mxu0 0.0
  %1311 = vmatpush1.msra.mxu0 %v1234
  %1312 = vmatprep.subr.mxu0 0.0
  %1313 = vmatpush1.msra.mxu0 %v1235
  %1314 = vmatprep.subr.mxu0 0.0
  %1315 = vmatpush1.msra.mxu0 %v1236
  %1316 = vmatprep.subr.mxu0 0.0
  %1317 = vmatpush1.msra.mxu0 %v1237
  %1318 = vmatprep.subr.mxu0 0.0
  %1319 = vmatpush1.msra.mxu0 %v1238
  %1320 = vmatprep.subr.mxu0 0.0
  %1321 = vmatpush1.msra.mxu0 %v1239
  %1322 = vmatprep.mubr.f32.mxu0 %v1255
  %1323 = vmatmul.mubr.f32.gmra.mrb[0].mxu0 %v1254
  %v1324 = vpop.f32.mrb[0].mxu0
  %v1325 = vadd.f32 %v1245, %v1324
  %v1326 = vpop.f32.mrb[0].mxu0
  %1327 = vdwg.mxu0
  %vm1328 = vcmask 517120
  %1329 = vst.msk [vmem:[%s10] sm:$0x3] %vm1328, %v1325
  // Predicated region
  $region42: #{_lambda_.1} parent=0 // pred_check
    _
  $region43: #{_lambda_.1} parent=0 // pred_check_branch
    %1331 = sbr.rel (0) target = $region45
  $region44: #{_lambda_.1} parent=0 // pred_region
    _
  $region45: #{_lambda_.1} parent=0 // pred_fallthru
    _
  // Predicated region
  $region46: #{_lambda_.1} parent=0 // pred_check
    _
  $region47: #{_lambda_.1} parent=0 // pred_check_branch
    %1333 = sbr.rel (0) target = $region49
  $region48: #{_lambda_.1} parent=0 // pred_region
    _
  $region49: #{_lambda_.1} parent=0 // pred_fallthru
    _

</llo_original>
